<compile_context>
chip_gen: v6e
topology: v6e:2x2x1
jax: 0.10.0
libtpu: 0.0.40
codegen_flags: <defaults>
</compile_context>

<pallas_src>
import functools

import jax
import jax.numpy as jnp
from jax import lax
from jax.experimental import pallas as pl
from jax.experimental.pallas import tpu as pltpu


def _round_up(x, m):
    return (x + m - 1) // m * m


def _tpu_generation():
    try:
        kind = jax.devices()[0].device_kind.lower()
    except Exception:
        return 0
    for g in (7, 6, 5, 4):
        if f"v{g}" in kind:
            return g
    return 0


# --------------------------------------------------------------------------- #
# Shared in-kernel pieces
# --------------------------------------------------------------------------- #
def _lstm_step(q_sc, r_sc, h_sc, c_sc, w_x_ref, w_r_ref, w_h_ref, b_ref,
               n_layers, dp):
    """One stacked-LSTM step (seq length 1) on (TB, Dp) state held in VMEM scratch.

    Weights are pre-transposed to (Dp, 4*Dp) with the four gates fused along the
    output dim (i | f | g | o): 2-3 canonical MXU matmuls per layer.  Gate slices
    are lane-aligned because Dp % 128 == 0.  Returns the top-layer h (the new q).
    """
    bf16 = jnp.bfloat16
    f32 = jnp.float32
    x_bf = q_sc[...].astype(bf16)              # layer-0 input, q half of q_star
    r_bf = r_sc[...].astype(bf16)              # layer-0 input, readout half
    h_top = None
    for l in range(n_layers):
        h_bf = h_sc[l].astype(bf16)
        gates = jnp.dot(x_bf, w_x_ref[l], preferred_element_type=f32)
        gates = gates + jnp.dot(h_bf, w_h_ref[l], preferred_element_type=f32)
        if l == 0:                             # readout half exists only for layer 0
            gates = gates + jnp.dot(r_bf, w_r_ref[0], preferred_element_type=f32)
        gates = gates + b_ref[l]
        # consume the gate slices in order to limit live (TB, Dp) f32 temporaries
        i_g = jax.nn.sigmoid(gates[:, 0 * dp:1 * dp])
        g_g = jnp.tanh(gates[:, 2 * dp:3 * dp])
        ig = i_g * g_g
        f_g = jax.nn.sigmoid(gates[:, 1 * dp:2 * dp])
        c_new = f_g * c_sc[l] + ig
        o_g = jax.nn.sigmoid(gates[:, 3 * dp:4 * dp])
        h_top = o_g * jnp.tanh(c_new)
        c_sc[l] = c_new
        h_sc[l] = h_top
        x_bf = h_top.astype(bf16)              # input of the next layer
    return h_top


def _segment_mask(seg_tile, tb, row0):
    """(TB, TN) membership mask built on the VPU from a (1, TN) seg-id tile."""
    tn = seg_tile.shape[1]
    row_ids = lax.broadcasted_iota(jnp.int32, (tb, tn), 0) + row0
    return row_ids == seg_tile


# --------------------------------------------------------------------------- #
# Kernel A: streaming node tiles (grid = batch_blocks x n_iters x node_tiles)
# --------------------------------------------------------------------------- #
def _set2set_stream_kernel(feat_ref, seg_ref, w_x_ref, w_r_ref, w_h_ref, b_ref,
                           out_ref,
                           h_sc, c_sc, q_sc, r_sc, m_sc, d_sc,
                           *, n_layers, dp, tb):
    it = pl.program_id(1)
    t = pl.program_id(2)
    last_it = pl.num_programs(1) - 1
    last_t = pl.num_programs(2) - 1
    neg = jnp.float32(-1e30)
    bf16 = jnp.bfloat16

    # -- first grid step of this batch block: zero the carried state ----------
    @pl.when((it == 0) & (t == 0))
    def _init():
        h_sc[...] = jnp.zeros_like(h_sc)
        c_sc[...] = jnp.zeros_like(c_sc)
        q_sc[...] = jnp.zeros_like(q_sc)
        r_sc[...] = jnp.zeros_like(r_sc)

    # -- once per Set2Set iteration: one stacked-LSTM step (seq length 1) -----
    @pl.when(t == 0)
    def _lstm():
        q_sc[...] = _lstm_step(q_sc, r_sc, h_sc, c_sc,
                               w_x_ref, w_r_ref, w_h_ref, b_ref, n_layers, dp)
        # reset the online-softmax accumulators for the node-tile sweep
        r_sc[...] = jnp.zeros_like(r_sc)
        m_sc[...] = jnp.full_like(m_sc, neg)
        d_sc[...] = jnp.zeros_like(d_sc)

    # -- every node tile: masked online segment softmax + readout update ------
    feat_t = feat_ref[...]                                     # (TN, Dp) bf16
    mask = _segment_mask(seg_ref[...], tb, pl.program_id(0) * tb)   # (TB, TN)
    q_bf = q_sc[...].astype(bf16)
    # scores = q @ feat_t.T without materializing a transpose of feat
    scores = lax.dot_general(q_bf, feat_t, (((1,), (1,)), ((), ())),
                             preferred_element_type=jnp.float32)    # (TB, TN)
    masked = jnp.where(mask, scores, neg)
    m_prev = m_sc[...]
    m_new = jnp.maximum(m_prev, jnp.max(masked, axis=-1, keepdims=True))
    rescale = jnp.exp(m_prev - m_new)                          # (TB, 1)
    # explicit mask on p: no reliance on exp underflow; empty graphs stay exactly 0
    p = jnp.where(mask, jnp.exp(masked - m_new), 0.0)
    d_sc[...] = rescale * d_sc[...] + jnp.sum(p, axis=-1, keepdims=True)
    r_sc[...] = rescale * r_sc[...] + jnp.dot(p.astype(bf16), feat_t,
                                              preferred_element_type=jnp.float32)
    m_sc[...] = m_new

    # -- last node tile: normalize the readout (input of the next LSTM step) --
    @pl.when(t == last_t)
    def _finalize():
        denom = jnp.maximum(d_sc[...], jnp.float32(1e-30))     # empty graphs -> r = 0
        r_sc[...] = r_sc[...] / denom

    # -- very last grid step of this batch block: emit q_star = [q | readout] --
    @pl.when((it == last_it) & (t == last_t))
    def _emit():
        out_ref[:, :dp] = q_sc[...].astype(out_ref.dtype)
        out_ref[:, dp:] = r_sc[...].astype(out_ref.dtype)


# --------------------------------------------------------------------------- #
# Kernel B: node set fully resident -> fold the n_iters loop into the kernel
# (grid = batch_blocks only; saves (n_iters-1) grid steps + pipeline bubbles)
# --------------------------------------------------------------------------- #
def _set2set_resident_kernel(feat_ref, seg_ref, w_x_ref, w_r_ref, w_h_ref, b_ref,
                             out_ref,
                             h_sc, c_sc, q_sc, r_sc,
                             *, n_layers, n_iters, dp, tb):
    neg = jnp.float32(-1e30)
    bf16 = jnp.bfloat16

    h_sc[...] = jnp.zeros_like(h_sc)
    c_sc[...] = jnp.zeros_like(c_sc)
    q_sc[...] = jnp.zeros_like(q_sc)
    r_sc[...] = jnp.zeros_like(r_sc)

    feat_t = feat_ref[...]                                     # (TN, Dp) bf16, resident
    mask = _segment_mask(seg_ref[...], tb, pl.program_id(0) * tb)   # (TB, TN)

    @pl.loop(0, n_iters)
    def _iter(_):
        q_new = _lstm_step(q_sc, r_sc, h_sc, c_sc,
                           w_x_ref, w_r_ref, w_h_ref, b_ref, n_layers, dp)
        q_sc[...] = q_new
        scores = lax.dot_general(q_new.astype(bf16), feat_t,
                                 (((1,), (1,)), ((), ())),
                                 preferred_element_type=jnp.float32)   # (TB, TN)
        masked = jnp.where(mask, scores, neg)
        m = jnp.max(masked, axis=-1, keepdims=True)
        p = jnp.where(mask, jnp.exp(masked - m), 0.0)
        denom = jnp.maximum(jnp.sum(p, axis=-1, keepdims=True), jnp.float32(1e-30))
        r_sc[...] = jnp.dot(p.astype(bf16), feat_t,
                            preferred_element_type=jnp.float32) / denom

    out_ref[:, :dp] = q_sc[...].astype(out_ref.dtype)
    out_ref[:, dp:] = r_sc[...].astype(out_ref.dtype)


# --------------------------------------------------------------------------- #
# Wrapper
# --------------------------------------------------------------------------- #
def set2set_pallas(feat, seg, batch_size, lstm_params, *, n_iters, node_tile=None):
    """Set2Set forward.

    feat:        (N, D) node features.
    seg:         (N,) int32 node -> graph id in [0, batch_size).
    lstm_params: list of (w_ih, w_hh, b_ih, b_hh) per layer, PyTorch layout
                 (layer 0: w_ih (4D, 2D); layers >= 1: w_ih (4D, D)).
    Returns (batch_size, 2D) float32 q_star.
    """
    N, D = feat.shape
    L = len(lstm_params)
    B = int(batch_size)
    assert n_iters >= 1 and L >= 1
    assert lstm_params[0][0].shape == (4 * D, 2 * D)

    gen = _tpu_generation()
    Dp = _round_up(D, 128)       # lane-pad features: unmasked stores, full MXU depth
    f32 = jnp.float32

    # ---- LSTM weights: per-layer, four gates fused along the output dim,
    #      pre-transposed to (in, out) (canonical MXU contraction), zero-padded ----
    w_x = jnp.zeros((L, Dp, 4 * Dp), f32)     # layer input (q half for layer 0)
    w_h = jnp.zeros((L, Dp, 4 * Dp), f32)     # recurrent
    w_r = jnp.zeros((1, Dp, 4 * Dp), f32)     # readout half of layer-0 W_ih
    bias = jnp.zeros((L, 1, 4 * Dp), f32)
    for l, (w_ih, w_hh, b_ih, b_hh) in enumerate(lstm_params):
        b_sum = (b_ih + b_hh).astype(f32)
        for g in range(4):                    # PyTorch gate order: i, f, g, o
            rows = slice(g * D, (g + 1) * D)
            cols = slice(g * Dp, g * Dp + D)
            w_x = w_x.at[l, :D, cols].set(w_ih[rows, :D].T.astype(f32))
            w_h = w_h.at[l, :D, cols].set(w_hh[rows, :].T.astype(f32))
            bias = bias.at[l, 0, cols].set(b_sum[rows])
            if l == 0:
                w_r = w_r.at[0, :D, cols].set(w_ih[rows, D:2 * D].T.astype(f32))
    w_x = w_x.astype(jnp.bfloat16)
    w_h = w_h.astype(jnp.bfloat16)
    w_r = w_r.astype(jnp.bfloat16)

    # ---- batch tiling --------------------------------------------------------------
    B8 = _round_up(B, 8)
    tb_cap = 256 if gen >= 6 else 128         # 256-wide MXU on v6e/v7x
    TB = min(B8, tb_cap)
    if gen >= 7 and B8 >= 16:
        # v7x has 2 TensorCores: make the "parallel" batch axis at least 2 blocks
        TB = min(TB, _round_up((B8 + 1) // 2, 8))
    B_pad = _round_up(B8, TB)

    # ---- node tiling: size the tile from the actual streamed bytes ------------------
    n8 = _round_up(N, 8)
    if node_tile is None:
        per_node_bytes = 2 * Dp + 4           # bf16 feat row + int32 seg id
        node_tile = min(2048, max(512, ((8 << 20) // (2 * per_node_bytes)) // 128 * 128))
    if node_tile >= n8:
        TN, N_pad, resident = n8, n8, True    # fully resident -> fold iters in-kernel
    else:
        TN = _round_up(node_tile, 128)
        N_pad, resident = _round_up(N, TN), False

    feat_p = jnp.zeros((N_pad, Dp), jnp.bfloat16).at[:N, :D].set(
        feat.astype(jnp.bfloat16))
    # padded node columns get seg id -1 so they never match any graph row
    seg_p = jnp.full((1, N_pad), -1, jnp.int32).at[0, :N].set(seg.astype(jnp.int32))

    # ---- specs -----------------------------------------------------------------------
    # Single-buffer the grid-constant LSTM weights only when the 2x pipelining copy is
    # big enough to matter for VMEM (v7x: 64 MiB); tiny weights keep the default path.
    single_buf_w = (w_x.size + w_h.size + w_r.size) * 2 > (1 << 20)
    w_mode = dict(pipeline_mode=pl.Buffered(1)) if single_buf_w else {}

    def weight_specs(idx3):
        return [pl.BlockSpec((L, Dp, 4 * Dp), idx3, **w_mode),    # w_x
                pl.BlockSpec((1, Dp, 4 * Dp), idx3, **w_mode),    # w_r
                pl.BlockSpec((L, Dp, 4 * Dp), idx3, **w_mode),    # w_h
                pl.BlockSpec((L, 1, 4 * Dp), idx3, **w_mode)]     # bias

    state_scratch = [
        pltpu.VMEM((L, TB, Dp), jnp.float32),   # h
        pltpu.VMEM((L, TB, Dp), jnp.float32),   # c
        pltpu.VMEM((TB, Dp), jnp.float32),      # q
        pltpu.VMEM((TB, Dp), jnp.float32),      # readout accumulator
    ]

    # ---- VMEM budget derived from the actual buffers ----------------------------------
    w_bytes = (w_x.size + w_h.size + w_r.size) * 2 + bias.size * 4
    est = (2 * (TN * Dp * 2 + 8 * TN * 4)              # double-buffered feat + seg tiles
           + (1 if single_buf_w else 2) * w_bytes      # weights
           + 2 * TB * 2 * Dp * 4                       # output block
           + (2 * L + 2) * TB * Dp * 4 + 4 * TB * 4    # scratch state
           + 3 * TB * TN * 4                           # scores / mask / p live values
           + 2 * TB * 4 * Dp * 4)                      # fused gate buffer + temps
    vmem_cap = (64 if gen >= 7 else 128) << 20
    vmem_limit = int(min(vmem_cap - (12 << 20), max(32 << 20, est + (8 << 20))))

    if resident:
        kernel = functools.partial(_set2set_resident_kernel,
                                   n_layers=L, n_iters=int(n_iters), dp=Dp, tb=TB)
        grid_spec = pltpu.PrefetchScalarGridSpec(
            num_scalar_prefetch=0,
            grid=(B_pad // TB,),
            in_specs=[pl.BlockSpec((TN, Dp), lambda b: (0, 0)),          # feat (bf16)
                      pl.BlockSpec((1, TN), lambda b: (0, 0)),           # seg ids
                      *weight_specs(lambda b: (0, 0, 0))],
            out_specs=pl.BlockSpec((TB, 2 * Dp), lambda b: (b, 0)),
            scratch_shapes=state_scratch)
        dims = ("parallel",)
    else:
        kernel = functools.partial(_set2set_stream_kernel, n_layers=L, dp=Dp, tb=TB)
        grid_spec = pltpu.PrefetchScalarGridSpec(
            num_scalar_prefetch=0,
            grid=(B_pad // TB, int(n_iters), N_pad // TN),
            in_specs=[pl.BlockSpec((TN, Dp), lambda b, i, t: (t, 0)),    # feat tile
                      pl.BlockSpec((1, TN), lambda b, i, t: (0, t)),     # seg-id tile
                      *weight_specs(lambda b, i, t: (0, 0, 0))],
            out_specs=pl.BlockSpec((TB, 2 * Dp), lambda b, i, t: (b, 0)),
            scratch_shapes=state_scratch + [
                pltpu.VMEM((TB, 1), jnp.float32),    # running max
                pltpu.VMEM((TB, 1), jnp.float32),    # running denominator
            ])
        dims = ("parallel", "arbitrary", "arbitrary")

    out = pl.pallas_call(
        kernel,
        out_shape=jax.ShapeDtypeStruct((B_pad, 2 * Dp), jnp.float32),
        grid_spec=grid_spec,
        compiler_params=pltpu.CompilerParams(
            dimension_semantics=dims, vmem_limit_bytes=vmem_limit),
    )(feat_p, seg_p, w_x, w_r, w_h, bias)

    if Dp == D:
        return out[:B]
    return jnp.concatenate([out[:B, :D], out[:B, Dp:Dp + D]], axis=-1)


# --------------------------------------------------------------------------- #
# References
# --------------------------------------------------------------------------- #
def set2set_reference_f32(feat, seg, batch_size, lstm_params, n_iters):
    """Exact (f32) translation of the PyTorch/DGL module using segment ops."""
    N, D = feat.shape
    L = len(lstm_params)
    B = batch_size
    feat = feat.astype(jnp.float32)
    h = [jnp.zeros((B, D), jnp.float32) for _ in range(L)]
    c = [jnp.zeros((B, D), jnp.float32) for _ in range(L)]
    q_star = jnp.zeros((B, 2 * D), jnp.float32)
    for _ in range(n_iters):
        x = q_star
        for l, (w_ih, w_hh, b_ih, b_hh) in enumerate(lstm_params):
            gates = x @ w_ih.T + h[l] @ w_hh.T + b_ih + b_hh
            i = jax.nn.sigmoid(gates[:, :D])
            f = jax.nn.sigmoid(gates[:, D:2 * D])
            g = jnp.tanh(gates[:, 2 * D:3 * D])
            o = jax.nn.sigmoid(gates[:, 3 * D:])
            c[l] = f * c[l] + i * g
            h[l] = o * jnp.tanh(c[l])
            x = h[l]
        q = h[-1]
        e = jnp.sum(feat * q[seg], axis=-1)
        emax = jax.ops.segment_max(e, seg, num_segments=B)
        ee = jnp.exp(e - emax[seg])
        denom = jax.ops.segment_sum(ee, seg, num_segments=B)
        alpha = ee / denom[seg]
        readout = jax.ops.segment_sum(feat * alpha[:, None], seg, num_segments=B)
        q_star = jnp.concatenate([q, readout], axis=-1)
    return q_star


def set2set_reference_bf16(feat, seg, batch_size, lstm_params, n_iters):
    """Pure-JAX reference mirroring the kernel numerics (bf16 MXU operands,
    f32 accumulation / elementwise), dense masked segment softmax."""
    N, D = feat.shape
    L = len(lstm_params)
    B = batch_size
    bf = jnp.bfloat16
    feat_bf = feat.astype(bf)
    mask = (seg[None, :] == jnp.arange(B, dtype=seg.dtype)[:, None])

    wq = [[lstm_params[l][0][g * D:(g + 1) * D, :D].astype(bf) for g in range(4)]
          for l in range(L)]
    wr = [lstm_params[0][0][g * D:(g + 1) * D, D:2 * D].astype(bf) for g in range(4)]
    whh = [[lstm_params[l][1][g * D:(g + 1) * D, :].astype(bf) for g in range(4)]
           for l in range(L)]
    bb = [[(lstm_params[l][2] + lstm_params[l][3])[g * D:(g + 1) * D]
           .astype(jnp.float32)[None, :] for g in range(4)] for l in range(L)]

    def mm(x_bf, w_bf):
        return lax.dot_general(x_bf, w_bf, (((1,), (1,)), ((), ())),
                               preferred_element_type=jnp.float32)

    h = [jnp.zeros((B, D), jnp.float32) for _ in range(L)]
    c = [jnp.zeros((B, D), jnp.float32) for _ in range(L)]
    q = jnp.zeros((B, D), jnp.float32)
    r = jnp.zeros((B, D), jnp.float32)
    for _ in range(n_iters):
        x_bf = q.astype(bf)
        r_bf = r.astype(bf)
        for l in range(L):
            h_bf = h[l].astype(bf)
            gates = []
            for g in range(4):
                acc = mm(x_bf, wq[l][g]) + mm(h_bf, whh[l][g]) + bb[l][g]
                if l == 0:
                    acc = acc + mm(r_bf, wr[g])
                gates.append(acc)
            i = jax.nn.sigmoid(gates[0])
            f = jax.nn.sigmoid(gates[1])
            g_ = jnp.tanh(gates[2])
            o = jax.nn.sigmoid(gates[3])
            c[l] = f * c[l] + i * g_
            h[l] = o * jnp.tanh(c[l])
            x_bf = h[l].astype(bf)
        q = h[-1]
        scores = mm(q.astype(bf), feat_bf)                    # (B, N)
        masked = jnp.where(mask, scores, jnp.float32(-1e30))
        m = jnp.max(masked, axis=-1, keepdims=True)
        p = jnp.where(mask, jnp.exp(masked - m), 0.0)
        denom = jnp.maximum(jnp.sum(p, axis=-1, keepdims=True), 1e-30)
        r = jnp.dot(p.astype(bf), feat_bf, preferred_element_type=jnp.float32) / denom
    return jnp.concatenate([q, r], axis=-1)


# --------------------------------------------------------------------------- #
# Demo / self-test
# --------------------------------------------------------------------------- #
if __name__ == "__main__":
    def make_params(key, D, n_layers):
        bound = 1.0 / float(D) ** 0.5
        params = []
        for l in range(n_layers):
            key, k1, k2, k3, k4 = jax.random.split(key, 5)
            in_dim = 2 * D if l == 0 else D
            params.append((
                jax.random.uniform(k1, (4 * D, in_dim), minval=-bound, maxval=bound,
                                   dtype=jnp.float32),
                jax.random.uniform(k2, (4 * D, D), minval=-bound, maxval=bound,
                                   dtype=jnp.float32),
                jax.random.uniform(k3, (4 * D,), minval=-bound, maxval=bound,
                                   dtype=jnp.float32),
                jax.random.uniform(k4, (4 * D,), minval=-bound, maxval=bound,
                                   dtype=jnp.float32),
            ))
        return key, params

    def run_case(key, D, sizes, n_iters, n_layers, node_tile):
        B = len(sizes)
        N = sum(sizes)
        key, kf = jax.random.split(key)
        feat = jax.random.normal(kf, (N, D), dtype=jnp.float32)
        seg = jnp.concatenate(
            [jnp.full((s,), i, jnp.int32) for i, s in enumerate(sizes)])
        key, params = make_params(key, D, n_layers)

        out = jax.block_until_ready(
            set2set_pallas(feat, seg, B, params, n_iters=n_iters,
                           node_tile=node_tile))
        assert out.shape == (B, 2 * D)

        ref_bf = set2set_reference_bf16(feat, seg, B, params, n_iters)
        ref_f32 = set2set_reference_f32(feat, seg, B, params, n_iters)
        err_bf = float(jnp.max(jnp.abs(out - ref_bf)))
        err_f32 = float(jnp.max(jnp.abs(out - ref_f32)))
        # tight check vs a reference with identical (bf16-operand) matmul numerics
        assert err_bf < 2e-2, f"kernel vs bf16-mirror reference err {err_bf}"
        # looser check vs the exact f32 module semantics (gap = bf16 MXU operands)
        assert err_f32 < 1.5e-1, f"kernel vs exact f32 reference err {err_f32}"
        return key

    key = jax.random.PRNGKey(0)
    # config 1: toy batch (B=2, N=16, D=32) -> resident path, iterations folded in-kernel
    key = run_case(key, D=32, sizes=[7, 9], n_iters=3, n_layers=2, node_tile=None)
    # config 2: streaming multi-tile online-softmax path (2 node tiles of 128)
    key = run_case(key, D=32, sizes=[70, 61, 69], n_iters=3, n_layers=1, node_tile=128)

    print("KERNEL_OK")
</pallas_src>

<mosaic_0001>
module attributes {stable_mosaic.version = 11 : i64} {
  func.func @_set2set_resident_kernel(%arg0: i32, %arg1: memref<16x128xbf16, #tpu.memory_space<vmem>>, %arg2: memref<1x16xi32, #tpu.memory_space<vmem>>, %arg3: memref<2x128x512xbf16, #tpu.memory_space<vmem>>, %arg4: memref<1x128x512xbf16, #tpu.memory_space<vmem>>, %arg5: memref<2x128x512xbf16, #tpu.memory_space<vmem>>, %arg6: memref<2x1x512xf32, #tpu.memory_space<vmem>>, %arg7: memref<8x256xf32, #tpu.memory_space<vmem>>, %arg8: memref<2x8x128xf32, #tpu.memory_space<vmem>>, %arg9: memref<2x8x128xf32, #tpu.memory_space<vmem>>, %arg10: memref<8x128xf32, #tpu.memory_space<vmem>>, %arg11: memref<8x128xf32, #tpu.memory_space<vmem>>) attributes {dimension_semantics = [#tpu.dimension_semantics<parallel>], iteration_bounds = array<i64: 1>, scalar_prefetch = 0 : i64, scratch_operands = 4 : i64, tpu.core_type = #tpu.core_type<tc>, window_params = [{pipeline_mode = #tpu.pipeline_mode<synchronous>, transform_indices = @transform_0, window_bounds = array<i64: 16, 128>}, {pipeline_mode = #tpu.pipeline_mode<synchronous>, transform_indices = @transform_1, window_bounds = array<i64: 1, 16>}, {pipeline_mode = #tpu.pipeline_mode<synchronous>, transform_indices = @transform_2, window_bounds = array<i64: 2, 128, 512>}, {pipeline_mode = #tpu.pipeline_mode<synchronous>, transform_indices = @transform_3, window_bounds = array<i64: 1, 128, 512>}, {pipeline_mode = #tpu.pipeline_mode<synchronous>, transform_indices = @transform_4, window_bounds = array<i64: 2, 128, 512>}, {pipeline_mode = #tpu.pipeline_mode<synchronous>, transform_indices = @transform_5, window_bounds = array<i64: 2, 1, 512>}, {transform_indices = @transform_6, window_bounds = array<i64: 8, 256>}]} {
    %cst = arith.constant 0.000000e+00 : f32
    %0 = vector.broadcast %cst : f32 to vector<2x8x128xf32>
    %c0 = arith.constant 0 : index
    %c0_0 = arith.constant 0 : index
    %c0_1 = arith.constant 0 : index
    %1 = vector.load %arg8[%c0, %c0_0, %c0_1] : memref<2x8x128xf32, #tpu.memory_space<vmem>>, vector<2x8x128xf32>
    tpu.vector_store %arg8[%c0, %c0_0, %c0_1], %0 {strides = array<i32>} : memref<2x8x128xf32, #tpu.memory_space<vmem>>, vector<2x8x128xf32>,
    %cst_2 = arith.constant 0.000000e+00 : f32
    %2 = vector.broadcast %cst_2 : f32 to vector<2x8x128xf32>
    %c0_3 = arith.constant 0 : index
    %c0_4 = arith.constant 0 : index
    %c0_5 = arith.constant 0 : index
    %3 = vector.load %arg9[%c0_3, %c0_4, %c0_5] : memref<2x8x128xf32, #tpu.memory_space<vmem>>, vector<2x8x128xf32>
    tpu.vector_store %arg9[%c0_3, %c0_4, %c0_5], %2 {strides = array<i32>} : memref<2x8x128xf32, #tpu.memory_space<vmem>>, vector<2x8x128xf32>,
    %cst_6 = arith.constant 0.000000e+00 : f32
    %4 = vector.broadcast %cst_6 : f32 to vector<8x128xf32>
    %c0_7 = arith.constant 0 : index
    %c0_8 = arith.constant 0 : index
    %5 = vector.load %arg10[%c0_7, %c0_8] : memref<8x128xf32, #tpu.memory_space<vmem>>, vector<8x128xf32>
    tpu.vector_store %arg10[%c0_7, %c0_8], %4 {strides = array<i32>} : memref<8x128xf32, #tpu.memory_space<vmem>>, vector<8x128xf32>,
    %cst_9 = arith.constant 0.000000e+00 : f32
    %6 = vector.broadcast %cst_9 : f32 to vector<8x128xf32>
    %c0_10 = arith.constant 0 : index
    %c0_11 = arith.constant 0 : index
    %7 = vector.load %arg11[%c0_10, %c0_11] : memref<8x128xf32, #tpu.memory_space<vmem>>, vector<8x128xf32>
    tpu.vector_store %arg11[%c0_10, %c0_11], %6 {strides = array<i32>} : memref<8x128xf32, #tpu.memory_space<vmem>>, vector<8x128xf32>,
    %c0_12 = arith.constant 0 : index
    %c0_13 = arith.constant 0 : index
    %8 = vector.load %arg1[%c0_12, %c0_13] : memref<16x128xbf16, #tpu.memory_space<vmem>>, vector<16x128xbf16>
    %c0_14 = arith.constant 0 : index
    %c0_15 = arith.constant 0 : index
    %9 = vector.load %arg2[%c0_14, %c0_15] : memref<1x16xi32, #tpu.memory_space<vmem>>, vector<1x16xi32>
    %c8_i32 = arith.constant 8 : i32
    %10 = arith.muli %arg0, %c8_i32 : i32
    %11 = tpu.iota {dimensions = array<i32: 0>} : vector<8x16xi32>
    %12 = vector.broadcast %10 : i32 to vector<8x16xi32>
    %13 = arith.addi %11, %12 : vector<8x16xi32>
    %14 = vector.broadcast %9 : vector<1x16xi32> to vector<8x16xi32>
    %15 = arith.cmpi eq, %13, %14 : vector<8x16xi32>
    %cst_16 = arith.constant -1.000000e+30 : f32
    %c0_i32 = arith.constant 0 : i32
    %c3_i32 = arith.constant 3 : i32
    %16 = arith.addi %c0_i32, %c3_i32 : i32
    %c1_i32 = arith.constant 1 : i32
    scf.for %arg12 = %c0_i32 to %16 step %c1_i32  : i32 {
      %c0_24 = arith.constant 0 : index
      %c0_25 = arith.constant 0 : index
      %21 = vector.load %arg10[%c0_24, %c0_25] : memref<8x128xf32, #tpu.memory_space<vmem>>, vector<8x128xf32>
      %22 = arith.truncf %21 : vector<8x128xf32> to vector<8x128xbf16>
      %c0_26 = arith.constant 0 : index
      %c0_27 = arith.constant 0 : index
      %23 = vector.load %arg11[%c0_26, %c0_27] : memref<8x128xf32, #tpu.memory_space<vmem>>, vector<8x128xf32>
      %24 = arith.truncf %23 : vector<8x128xf32> to vector<8x128xbf16>
      %c0_28 = arith.constant 0 : index
      %c0_29 = arith.constant 0 : index
      %c0_30 = arith.constant 0 : index
      %25 = vector.load %arg8[%c0_28, %c0_29, %c0_30] : memref<2x8x128xf32, #tpu.memory_space<vmem>>, vector<1x8x128xf32>
      %26 = vector.shape_cast %25 : vector<1x8x128xf32> to vector<8x128xf32>
      %27 = arith.truncf %26 : vector<8x128xf32> to vector<8x128xbf16>
      %c0_31 = arith.constant 0 : index
      %c0_32 = arith.constant 0 : index
      %c0_33 = arith.constant 0 : index
      %28 = vector.load %arg3[%c0_31, %c0_32, %c0_33] : memref<2x128x512xbf16, #tpu.memory_space<vmem>>, vector<1x128x512xbf16>
      %29 = vector.shape_cast %28 : vector<1x128x512xbf16> to vector<128x512xbf16>
      %cst_34 = arith.constant dense<0.000000e+00> : vector<8x512xf32>
      %30 = tpu.matmul %22, %29, %cst_34 {dimension_numbers = #tpu.dot_dimension_numbers<[1], [0], [0], [1], [0, 0, 1, 1], [], []>} : vector<8x128xbf16>, vector<128x512xbf16>, vector<8x512xf32> -> vector<8x512xf32>
      %c0_35 = arith.constant 0 : index
      %c0_36 = arith.constant 0 : index
      %c0_37 = arith.constant 0 : index
      %31 = vector.load %arg5[%c0_35, %c0_36, %c0_37] : memref<2x128x512xbf16, #tpu.memory_space<vmem>>, vector<1x128x512xbf16>
      %32 = vector.shape_cast %31 : vector<1x128x512xbf16> to vector<128x512xbf16>
      %cst_38 = arith.constant dense<0.000000e+00> : vector<8x512xf32>
      %33 = tpu.matmul %27, %32, %cst_38 {dimension_numbers = #tpu.dot_dimension_numbers<[1], [0], [0], [1], [0, 0, 1, 1], [], []>} : vector<8x128xbf16>, vector<128x512xbf16>, vector<8x512xf32> -> vector<8x512xf32>
      %34 = arith.addf %30, %33 : vector<8x512xf32>
      %c0_39 = arith.constant 0 : index
      %c0_40 = arith.constant 0 : index
      %c0_41 = arith.constant 0 : index
      %35 = vector.load %arg4[%c0_39, %c0_40, %c0_41] : memref<1x128x512xbf16, #tpu.memory_space<vmem>>, vector<1x128x512xbf16>
      %36 = vector.shape_cast %35 : vector<1x128x512xbf16> to vector<128x512xbf16>
      %cst_42 = arith.constant dense<0.000000e+00> : vector<8x512xf32>
      %37 = tpu.matmul %24, %36, %cst_42 {dimension_numbers = #tpu.dot_dimension_numbers<[1], [0], [0], [1], [0, 0, 1, 1], [], []>} : vector<8x128xbf16>, vector<128x512xbf16>, vector<8x512xf32> -> vector<8x512xf32>
      %38 = arith.addf %34, %37 : vector<8x512xf32>
      %c0_43 = arith.constant 0 : index
      %c0_44 = arith.constant 0 : index
      %c0_45 = arith.constant 0 : index
      %39 = vector.load %arg6[%c0_43, %c0_44, %c0_45] : memref<2x1x512xf32, #tpu.memory_space<vmem>>, vector<1x1x512xf32>
      %40 = vector.shape_cast %39 : vector<1x1x512xf32> to vector<1x512xf32>
      %41 = vector.broadcast %40 : vector<1x512xf32> to vector<8x512xf32>
      %42 = arith.addf %38, %41 : vector<8x512xf32>
      %43 = vector.extract_strided_slice %42 {offsets = [0, 0], sizes = [8, 128], strides = [1, 1]} : vector<8x512xf32> to vector<8x128xf32>
      %44 = arith.negf %43 : vector<8x128xf32>
      %45 = math.exp %44 : vector<8x128xf32>
      %cst_46 = arith.constant 1.000000e+00 : f32
      %46 = vector.broadcast %cst_46 : f32 to vector<8x128xf32>
      %47 = arith.addf %46, %45 : vector<8x128xf32>
      %48 = arith.divf %46, %47 : vector<8x128xf32>
      %49 = vector.extract_strided_slice %42 {offsets = [0, 256], sizes = [8, 128], strides = [1, 1]} : vector<8x512xf32> to vector<8x128xf32>
      %50 = math.tanh %49 : vector<8x128xf32>
      %51 = arith.mulf %48, %50 : vector<8x128xf32>
      %52 = vector.extract_strided_slice %42 {offsets = [0, 128], sizes = [8, 128], strides = [1, 1]} : vector<8x512xf32> to vector<8x128xf32>
      %53 = arith.negf %52 : vector<8x128xf32>
      %54 = math.exp %53 : vector<8x128xf32>
      %cst_47 = arith.constant 1.000000e+00 : f32
      %55 = vector.broadcast %cst_47 : f32 to vector<8x128xf32>
      %56 = arith.addf %55, %54 : vector<8x128xf32>
      %57 = arith.divf %55, %56 : vector<8x128xf32>
      %c0_48 = arith.constant 0 : index
      %c0_49 = arith.constant 0 : index
      %c0_50 = arith.constant 0 : index
      %58 = vector.load %arg9[%c0_48, %c0_49, %c0_50] : memref<2x8x128xf32, #tpu.memory_space<vmem>>, vector<1x8x128xf32>
      %59 = vector.shape_cast %58 : vector<1x8x128xf32> to vector<8x128xf32>
      %60 = arith.mulf %57, %59 : vector<8x128xf32>
      %61 = arith.addf %60, %51 : vector<8x128xf32>
      %62 = vector.extract_strided_slice %42 {offsets = [0, 384], sizes = [8, 128], strides = [1, 1]} : vector<8x512xf32> to vector<8x128xf32>
      %63 = arith.negf %62 : vector<8x128xf32>
      %64 = math.exp %63 : vector<8x128xf32>
      %cst_51 = arith.constant 1.000000e+00 : f32
      %65 = vector.broadcast %cst_51 : f32 to vector<8x128xf32>
      %66 = arith.addf %65, %64 : vector<8x128xf32>
      %67 = arith.divf %65, %66 : vector<8x128xf32>
      %68 = math.tanh %61 : vector<8x128xf32>
      %69 = arith.mulf %67, %68 : vector<8x128xf32>
      %c0_52 = arith.constant 0 : index
      %c0_53 = arith.constant 0 : index
      %c0_54 = arith.constant 0 : index
      %70 = vector.load %arg9[%c0_52, %c0_53, %c0_54] : memref<2x8x128xf32, #tpu.memory_space<vmem>>, vector<1x8x128xf32>
      %71 = vector.shape_cast %70 : vector<1x8x128xf32> to vector<8x128xf32>
      %72 = vector.shape_cast %61 : vector<8x128xf32> to vector<1x8x128xf32>
      tpu.vector_store %arg9[%c0_52, %c0_53, %c0_54], %72 {strides = array<i32>} : memref<2x8x128xf32, #tpu.memory_space<vmem>>, vector<1x8x128xf32>,
      %c0_55 = arith.constant 0 : index
      %c0_56 = arith.constant 0 : index
      %c0_57 = arith.constant 0 : index
      %73 = vector.load %arg8[%c0_55, %c0_56, %c0_57] : memref<2x8x128xf32, #tpu.memory_space<vmem>>, vector<1x8x128xf32>
      %74 = vector.shape_cast %73 : vector<1x8x128xf32> to vector<8x128xf32>
      %75 = vector.shape_cast %69 : vector<8x128xf32> to vector<1x8x128xf32>
      tpu.vector_store %arg8[%c0_55, %c0_56, %c0_57], %75 {strides = array<i32>} : memref<2x8x128xf32, #tpu.memory_space<vmem>>, vector<1x8x128xf32>,
      %76 = arith.truncf %69 : vector<8x128xf32> to vector<8x128xbf16>
      %c1 = arith.constant 1 : index
      %c0_58 = arith.constant 0 : index
      %c0_59 = arith.constant 0 : index
      %77 = vector.load %arg8[%c1, %c0_58, %c0_59] : memref<2x8x128xf32, #tpu.memory_space<vmem>>, vector<1x8x128xf32>
      %78 = vector.shape_cast %77 : vector<1x8x128xf32> to vector<8x128xf32>
      %79 = arith.truncf %78 : vector<8x128xf32> to vector<8x128xbf16>
      %c1_60 = arith.constant 1 : index
      %c0_61 = arith.constant 0 : index
      %c0_62 = arith.constant 0 : index
      %80 = vector.load %arg3[%c1_60, %c0_61, %c0_62] : memref<2x128x512xbf16, #tpu.memory_space<vmem>>, vector<1x128x512xbf16>
      %81 = vector.shape_cast %80 : vector<1x128x512xbf16> to vector<128x512xbf16>
      %cst_63 = arith.constant dense<0.000000e+00> : vector<8x512xf32>
      %82 = tpu.matmul %76, %81, %cst_63 {dimension_numbers = #tpu.dot_dimension_numbers<[1], [0], [0], [1], [0, 0, 1, 1], [], []>} : vector<8x128xbf16>, vector<128x512xbf16>, vector<8x512xf32> -> vector<8x512xf32>
      %c1_64 = arith.constant 1 : index
      %c0_65 = arith.constant 0 : index
      %c0_66 = arith.constant 0 : index
      %83 = vector.load %arg5[%c1_64, %c0_65, %c0_66] : memref<2x128x512xbf16, #tpu.memory_space<vmem>>, vector<1x128x512xbf16>
      %84 = vector.shape_cast %83 : vector<1x128x512xbf16> to vector<128x512xbf16>
      %cst_67 = arith.constant dense<0.000000e+00> : vector<8x512xf32>
      %85 = tpu.matmul %79, %84, %cst_67 {dimension_numbers = #tpu.dot_dimension_numbers<[1], [0], [0], [1], [0, 0, 1, 1], [], []>} : vector<8x128xbf16>, vector<128x512xbf16>, vector<8x512xf32> -> vector<8x512xf32>
      %86 = arith.addf %82, %85 : vector<8x512xf32>
      %c1_68 = arith.constant 1 : index
      %c0_69 = arith.constant 0 : index
      %c0_70 = arith.constant 0 : index
      %87 = vector.load %arg6[%c1_68, %c0_69, %c0_70] : memref<2x1x512xf32, #tpu.memory_space<vmem>>, vector<1x1x512xf32>
      %88 = vector.shape_cast %87 : vector<1x1x512xf32> to vector<1x512xf32>
      %89 = vector.broadcast %88 : vector<1x512xf32> to vector<8x512xf32>
      %90 = arith.addf %86, %89 : vector<8x512xf32>
      %91 = vector.extract_strided_slice %90 {offsets = [0, 0], sizes = [8, 128], strides = [1, 1]} : vector<8x512xf32> to vector<8x128xf32>
      %92 = arith.negf %91 : vector<8x128xf32>
      %93 = math.exp %92 : vector<8x128xf32>
      %cst_71 = arith.constant 1.000000e+00 : f32
      %94 = vector.broadcast %cst_71 : f32 to vector<8x128xf32>
      %95 = arith.addf %94, %93 : vector<8x128xf32>
      %96 = arith.divf %94, %95 : vector<8x128xf32>
      %97 = vector.extract_strided_slice %90 {offsets = [0, 256], sizes = [8, 128], strides = [1, 1]} : vector<8x512xf32> to vector<8x128xf32>
      %98 = math.tanh %97 : vector<8x128xf32>
      %99 = arith.mulf %96, %98 : vector<8x128xf32>
      %100 = vector.extract_strided_slice %90 {offsets = [0, 128], sizes = [8, 128], strides = [1, 1]} : vector<8x512xf32> to vector<8x128xf32>
      %101 = arith.negf %100 : vector<8x128xf32>
      %102 = math.exp %101 : vector<8x128xf32>
      %cst_72 = arith.constant 1.000000e+00 : f32
      %103 = vector.broadcast %cst_72 : f32 to vector<8x128xf32>
      %104 = arith.addf %103, %102 : vector<8x128xf32>
      %105 = arith.divf %103, %104 : vector<8x128xf32>
      %c1_73 = arith.constant 1 : index
      %c0_74 = arith.constant 0 : index
      %c0_75 = arith.constant 0 : index
      %106 = vector.load %arg9[%c1_73, %c0_74, %c0_75] : memref<2x8x128xf32, #tpu.memory_space<vmem>>, vector<1x8x128xf32>
      %107 = vector.shape_cast %106 : vector<1x8x128xf32> to vector<8x128xf32>
      %108 = arith.mulf %105, %107 : vector<8x128xf32>
      %109 = arith.addf %108, %99 : vector<8x128xf32>
      %110 = vector.extract_strided_slice %90 {offsets = [0, 384], sizes = [8, 128], strides = [1, 1]} : vector<8x512xf32> to vector<8x128xf32>
      %111 = arith.negf %110 : vector<8x128xf32>
      %112 = math.exp %111 : vector<8x128xf32>
      %cst_76 = arith.constant 1.000000e+00 : f32
      %113 = vector.broadcast %cst_76 : f32 to vector<8x128xf32>
      %114 = arith.addf %113, %112 : vector<8x128xf32>
      %115 = arith.divf %113, %114 : vector<8x128xf32>
      %116 = math.tanh %109 : vector<8x128xf32>
      %117 = arith.mulf %115, %116 : vector<8x128xf32>
      %c1_77 = arith.constant 1 : index
      %c0_78 = arith.constant 0 : index
      %c0_79 = arith.constant 0 : index
      %118 = vector.load %arg9[%c1_77, %c0_78, %c0_79] : memref<2x8x128xf32, #tpu.memory_space<vmem>>, vector<1x8x128xf32>
      %119 = vector.shape_cast %118 : vector<1x8x128xf32> to vector<8x128xf32>
      %120 = vector.shape_cast %109 : vector<8x128xf32> to vector<1x8x128xf32>
      tpu.vector_store %arg9[%c1_77, %c0_78, %c0_79], %120 {strides = array<i32>} : memref<2x8x128xf32, #tpu.memory_space<vmem>>, vector<1x8x128xf32>,
      %c1_80 = arith.constant 1 : index
      %c0_81 = arith.constant 0 : index
      %c0_82 = arith.constant 0 : index
      %121 = vector.load %arg8[%c1_80, %c0_81, %c0_82] : memref<2x8x128xf32, #tpu.memory_space<vmem>>, vector<1x8x128xf32>
      %122 = vector.shape_cast %121 : vector<1x8x128xf32> to vector<8x128xf32>
      %123 = vector.shape_cast %117 : vector<8x128xf32> to vector<1x8x128xf32>
      tpu.vector_store %arg8[%c1_80, %c0_81, %c0_82], %123 {strides = array<i32>} : memref<2x8x128xf32, #tpu.memory_space<vmem>>, vector<1x8x128xf32>,
      %c0_83 = arith.constant 0 : index
      %c0_84 = arith.constant 0 : index
      %124 = vector.load %arg10[%c0_83, %c0_84] : memref<8x128xf32, #tpu.memory_space<vmem>>, vector<8x128xf32>
      tpu.vector_store %arg10[%c0_83, %c0_84], %117 {strides = array<i32>} : memref<8x128xf32, #tpu.memory_space<vmem>>, vector<8x128xf32>,
      %125 = arith.truncf %117 : vector<8x128xf32> to vector<8x128xbf16>
      %cst_85 = arith.constant dense<0.000000e+00> : vector<8x16xf32>
      %126 = tpu.matmul %125, %8, %cst_85 {dimension_numbers = #tpu.dot_dimension_numbers<[1], [1], [0], [0], [0, 0, 1, 0], [], []>} : vector<8x128xbf16>, vector<16x128xbf16>, vector<8x16xf32> -> vector<8x16xf32>
      %127 = vector.broadcast %cst_16 : f32 to vector<8x16xf32>
      %128 = arith.select %15, %126, %127 : vector<8x16xi1>, vector<8x16xf32>
      %cst_86 = arith.constant dense<0xFF800000> : vector<8xf32>
      %129 = vector.multi_reduction <maximumf>, %128, %cst_86 [1] : vector<8x16xf32> to vector<8xf32>
      %130 = vector.shape_cast %129 : vector<8xf32> to vector<8x1xf32>
      %131 = vector.broadcast %130 : vector<8x1xf32> to vector<8x16xf32>
      %132 = arith.subf %128, %131 : vector<8x16xf32>
      %133 = math.exp %132 : vector<8x16xf32>
      %cst_87 = arith.constant 0.000000e+00 : f32
      %134 = vector.broadcast %cst_87 : f32 to vector<8x16xf32>
      %135 = arith.select %15, %133, %134 : vector<8x16xi1>, vector<8x16xf32>
      %cst_88 = arith.constant dense<0.000000e+00> : vector<8xf32>
      %136 = vector.multi_reduction <add>, %135, %cst_88 [1] : vector<8x16xf32> to vector<8xf32>
      %137 = vector.shape_cast %136 : vector<8xf32> to vector<8x1xf32>
      %cst_89 = arith.constant 1.000000e-30 : f32
      %138 = vector.broadcast %cst_89 : f32 to vector<8x1xf32>
      %139 = arith.maximumf %137, %138 : vector<8x1xf32>
      %140 = arith.truncf %135 : vector<8x16xf32> to vector<8x16xbf16>
      %cst_90 = arith.constant dense<0.000000e+00> : vector<8x128xf32>
      %141 = tpu.matmul %140, %8, %cst_90 {dimension_numbers = #tpu.dot_dimension_numbers<[1], [0], [0], [1], [0, 0, 1, 1], [], []>} : vector<8x16xbf16>, vector<16x128xbf16>, vector<8x128xf32> -> vector<8x128xf32>
      %142 = vector.broadcast %139 : vector<8x1xf32> to vector<8x128xf32>
      %143 = arith.divf %141, %142 : vector<8x128xf32>
      %c0_91 = arith.constant 0 : index
      %c0_92 = arith.constant 0 : index
      %144 = vector.load %arg11[%c0_91, %c0_92] : memref<8x128xf32, #tpu.memory_space<vmem>>, vector<8x128xf32>
      tpu.vector_store %arg11[%c0_91, %c0_92], %143 {strides = array<i32>} : memref<8x128xf32, #tpu.memory_space<vmem>>, vector<8x128xf32>,
    }
    %c0_17 = arith.constant 0 : index
    %c0_18 = arith.constant 0 : index
    %17 = vector.load %arg10[%c0_17, %c0_18] : memref<8x128xf32, #tpu.memory_space<vmem>>, vector<8x128xf32>
    %c0_19 = arith.constant 0 : index
    %c0_20 = arith.constant 0 : index
    %18 = vector.load %arg7[%c0_19, %c0_20] : memref<8x256xf32, #tpu.memory_space<vmem>>, vector<8x128xf32>
    tpu.vector_store %arg7[%c0_19, %c0_20], %17 {strides = array<i32>} : memref<8x256xf32, #tpu.memory_space<vmem>>, vector<8x128xf32>,
    %c0_21 = arith.constant 0 : index
    %c0_22 = arith.constant 0 : index
    %19 = vector.load %arg11[%c0_21, %c0_22] : memref<8x128xf32, #tpu.memory_space<vmem>>, vector<8x128xf32>
    %c0_23 = arith.constant 0 : index
    %c128 = arith.constant 128 : index
    %20 = vector.load %arg7[%c0_23, %c128] : memref<8x256xf32, #tpu.memory_space<vmem>>, vector<8x128xf32>
    tpu.vector_store %arg7[%c0_23, %c128], %19 {strides = array<i32>} : memref<8x256xf32, #tpu.memory_space<vmem>>, vector<8x128xf32>,
    return
  }
  func.func @transform_0(%arg0: i32) -> (i32, i32) {
    %c0_i32 = arith.constant 0 : i32
    %c0_i32_0 = arith.constant 0 : i32
    %c0_i32_1 = arith.constant 0 : i32
    return %c0_i32, %c0_i32_0 : i32, i32
  }
  func.func @transform_1(%arg0: i32) -> (i32, i32) {
    %c0_i32 = arith.constant 0 : i32
    %c0_i32_0 = arith.constant 0 : i32
    %c0_i32_1 = arith.constant 0 : i32
    return %c0_i32, %c0_i32_0 : i32, i32
  }
  func.func @transform_2(%arg0: i32) -> (i32, i32, i32) {
    %c0_i32 = arith.constant 0 : i32
    %c0_i32_0 = arith.constant 0 : i32
    %c0_i32_1 = arith.constant 0 : i32
    %c0_i32_2 = arith.constant 0 : i32
    return %c0_i32, %c0_i32_0, %c0_i32_1 : i32, i32, i32
  }
  func.func @transform_3(%arg0: i32) -> (i32, i32, i32) {
    %c0_i32 = arith.constant 0 : i32
    %c0_i32_0 = arith.constant 0 : i32
    %c0_i32_1 = arith.constant 0 : i32
    %c0_i32_2 = arith.constant 0 : i32
    return %c0_i32, %c0_i32_0, %c0_i32_1 : i32, i32, i32
  }
  func.func @transform_4(%arg0: i32) -> (i32, i32, i32) {
    %c0_i32 = arith.constant 0 : i32
    %c0_i32_0 = arith.constant 0 : i32
    %c0_i32_1 = arith.constant 0 : i32
    %c0_i32_2 = arith.constant 0 : i32
    return %c0_i32, %c0_i32_0, %c0_i32_1 : i32, i32, i32
  }
  func.func @transform_5(%arg0: i32) -> (i32, i32, i32) {
    %c0_i32 = arith.constant 0 : i32
    %c0_i32_0 = arith.constant 0 : i32
    %c0_i32_1 = arith.constant 0 : i32
    %c0_i32_2 = arith.constant 0 : i32
    return %c0_i32, %c0_i32_0, %c0_i32_1 : i32, i32, i32
  }
  func.func @transform_6(%arg0: i32) -> (i32, i32) {
    %c0_i32 = arith.constant 0 : i32
    %c0_i32_0 = arith.constant 0 : i32
    return %arg0, %c0_i32 : i32, i32
  }
}

</mosaic_0001>

<llo_original>
// kernel: tpu_custom_call.1
$region0: #{tpu_custom_call.1}
  #allocation0 [shape = 'u32[]', space=smem, size = 0x4, offset = 0x4, fixed_abs, tag = 'smem constant byte address 0x4 - core index']
  #allocation1 [shape = 'u32[144,128]{1,0:T(1,128)}', space=vmem, size = 0x12000, scoped, tag = 'internal scratch']
  #allocation2 [shape = 'f32[2,8,128]{2,1,0:T(8,128)}', space=vmem, size = 0x2000, scoped, tag = 'scratch operand']
  #allocation3 [shape = 'f32[2,8,128]{2,1,0:T(8,128)}', space=vmem, size = 0x2000, scoped, tag = 'scratch operand']
  #allocation4 [shape = 'f32[8,128]{1,0:T(8,128)}', space=vmem, size = 0x1000, scoped, tag = 'scratch operand']
  #allocation5 [shape = 'f32[8,128]{1,0:T(8,128)}', space=vmem, size = 0x1000, scoped, tag = 'scratch operand']
  %s0 = inlined_call_operand.hbm [shape: bf16[16,128], index: 0, kind: input, shape index: {}]
  %s1 = inlined_call_operand.vmem [shape: s32[1,16], index: 1, kind: input, shape index: {}]
  %s2 = inlined_call_operand.hbm [shape: bf16[2,128,512], index: 2, kind: input, shape index: {}]
  %s3 = inlined_call_operand.hbm [shape: bf16[1,128,512], index: 3, kind: input, shape index: {}]
  %s4 = inlined_call_operand.hbm [shape: bf16[2,128,512], index: 4, kind: input, shape index: {}]
  %s5 = inlined_call_operand.vmem [shape: f32[2,1,512], index: 5, kind: input, shape index: {}]
  %s6 = inlined_call_operand.hbm [shape: f32[8,256], index: 6, kind: output, shape index: {}]
  %s7 = sld [smem:[#allocation0]]
  $region57: #{tpu_custom_call.1} parent=0
    _
  %s9 = ssub.s32 1, %s7
  %s10 = scalar_select 0, %s9, %s7
  $region1: #{tpu_custom_call.1} parent=0
    #allocation6 [shape = 'u8[4096]{0}', space=vmem, size = 0x1000, scoped, tag = 'input window, operand 0, single buffered']
    #allocation7 [shape = 's32[1]{0}', space=sflag, size = 0x4, scoped, tag = 'scoped memory for tpu_custom_call.1']
    #allocation8 [shape = 's32[1]{0}', space=sflag, size = 0x4, scoped, tag = 'scoped memory for tpu_custom_call.1']
    #allocation9 [shape = 'u8[262144]{0}', space=vmem, size = 0x40000, scoped, tag = 'input window, operand 2, single buffered']
    #allocation10 [shape = 's32[1]{0}', space=sflag, size = 0x4, scoped, tag = 'scoped memory for tpu_custom_call.1']
    #allocation11 [shape = 'u8[131072]{0}', space=vmem, size = 0x20000, scoped, tag = 'input window, operand 3, single buffered']
    #allocation12 [shape = 'u8[262144]{0}', space=vmem, size = 0x40000, scoped, tag = 'input window, operand 4, single buffered']
    #allocation13 [shape = 's32[1]{0}', space=sflag, size = 0x4, scoped, tag = 'scoped memory for tpu_custom_call.1']
    #allocation14 [shape = 'u8[8192]{0}', space=vmem, size = 0x2000, scoped, tag = 'output window, operand 0, single buffered']
    %11 = vsyncpa [#allocation7], 0
    %12 = vsyncpa [#allocation10], 0
    %13 = vsyncpa [#allocation13], 0
    %14 = vsyncpa [#allocation8], 0
    // Predicated region
    $region2: #{tpu_custom_call.1} parent=1 // pred_check
      _
    $region3: #{tpu_custom_call.1} parent=1 // pred_check_branch
      %16 = sbr.rel (0) target = $region5
    $region4: #{tpu_custom_call.1} parent=1 // pred_region
      %s18 = ssub.s32 128, 128
      %19 = vsyncadd [#allocation7], %s18
      %s20 = sshll.u32 [#allocation6], 4
      %s21 = int_to_ptr.vmem [resolvable:$true] %s20
      %26 = dma.hbm_to_vmem [thread:$0]  %s0, 128, %s21, [#allocation7], 64, 64, 4
    $region5: #{tpu_custom_call.1} parent=1 // pred_fallthru
      _
    // Predicated region
    $region6: #{tpu_custom_call.1} parent=1 // pred_check
      _
    $region7: #{tpu_custom_call.1} parent=1 // pred_check_branch
      %28 = sbr.rel (0) target = $region9
    $region8: #{tpu_custom_call.1} parent=1 // pred_region
      _
    $region9: #{tpu_custom_call.1} parent=1 // pred_fallthru
      _
    // Predicated region
    $region10: #{tpu_custom_call.1} parent=1 // pred_check
      _
    $region11: #{tpu_custom_call.1} parent=1 // pred_check_branch
      %30 = sbr.rel (0) target = $region13
    $region12: #{tpu_custom_call.1} parent=1 // pred_region
      %s32 = ssub.s32 8192, 8192
      %33 = vsyncadd [#allocation10], %s32
      %s34 = sshll.u32 [#allocation9], 4
      %s35 = int_to_ptr.vmem [resolvable:$true] %s34
      %40 = dma.hbm_to_vmem [thread:$0]  %s2, 8192, %s35, [#allocation10], 256, 256, 16
    $region13: #{tpu_custom_call.1} parent=1 // pred_fallthru
      _
    // Predicated region
    $region14: #{tpu_custom_call.1} parent=1 // pred_check
      _
    $region15: #{tpu_custom_call.1} parent=1 // pred_check_branch
      %42 = sbr.rel (0) target = $region17
    $region16: #{tpu_custom_call.1} parent=1 // pred_region
      %s44 = ssub.s32 4096, 4096
      %45 = vsyncadd [#allocation10], %s44
      %s46 = sshll.u32 [#allocation11], 4
      %s47 = int_to_ptr.vmem [resolvable:$true] %s46
      %52 = dma.hbm_to_vmem [thread:$0]  %s3, 4096, %s47, [#allocation10], 256, 256, 16
    $region17: #{tpu_custom_call.1} parent=1 // pred_fallthru
      _
    // Predicated region
    $region18: #{tpu_custom_call.1} parent=1 // pred_check
      _
    $region19: #{tpu_custom_call.1} parent=1 // pred_check_branch
      %54 = sbr.rel (0) target = $region21
    $region20: #{tpu_custom_call.1} parent=1 // pred_region
      %s56 = ssub.s32 8192, 8192
      %57 = vsyncadd [#allocation13], %s56
      %s58 = sshll.u32 [#allocation12], 4
      %s59 = int_to_ptr.vmem [resolvable:$true] %s58
      %64 = dma.hbm_to_vmem [thread:$0]  %s4, 8192, %s59, [#allocation13], 256, 256, 16
    $region21: #{tpu_custom_call.1} parent=1 // pred_fallthru
      _
    // Predicated region
    $region22: #{tpu_custom_call.1} parent=1 // pred_check
      _
    $region23: #{tpu_custom_call.1} parent=1 // pred_check_branch
      %66 = sbr.rel (0) target = $region25
    $region24: #{tpu_custom_call.1} parent=1 // pred_region
      _
    $region25: #{tpu_custom_call.1} parent=1 // pred_fallthru
      _
    // Predicated region
    $region26: #{tpu_custom_call.1} parent=1 // pred_check
      _
    $region27: #{tpu_custom_call.1} parent=1 // pred_check_branch
      %68 = sbr.rel (0) target = $region29
    $region28: #{tpu_custom_call.1} parent=1 // pred_region
      %69 = dma.done [#allocation7], 128
    $region29: #{tpu_custom_call.1} parent=1 // pred_fallthru
      _
    // Predicated region
    $region30: #{tpu_custom_call.1} parent=1 // pred_check
      _
    $region31: #{tpu_custom_call.1} parent=1 // pred_check_branch
      %71 = sbr.rel (0) target = $region33
    $region32: #{tpu_custom_call.1} parent=1 // pred_region
      %72 = dma.done [#allocation10], 8192
    $region33: #{tpu_custom_call.1} parent=1 // pred_fallthru
      _
    // Predicated region
    $region34: #{tpu_custom_call.1} parent=1 // pred_check
      _
    $region35: #{tpu_custom_call.1} parent=1 // pred_check_branch
      %74 = sbr.rel (0) target = $region37
    $region36: #{tpu_custom_call.1} parent=1 // pred_region
      %75 = dma.done [#allocation10], 4096
    $region37: #{tpu_custom_call.1} parent=1 // pred_fallthru
      _
    // Predicated region
    $region38: #{tpu_custom_call.1} parent=1 // pred_check
      _
    $region39: #{tpu_custom_call.1} parent=1 // pred_check_branch
      %77 = sbr.rel (0) target = $region41
    $region40: #{tpu_custom_call.1} parent=1 // pred_region
      %78 = dma.done [#allocation13], 8192
    $region41: #{tpu_custom_call.1} parent=1 // pred_fallthru
      _
    %80 = vst [vmem:[#allocation2] sm:$0xff] 0.0
    %81 = vst [vmem:[#allocation2 + $0x8] sm:$0xff] 0.0
    %82 = vst [vmem:[#allocation3] sm:$0xff] 0.0
    %83 = vst [vmem:[#allocation3 + $0x8] sm:$0xff] 0.0
    %84 = vst [vmem:[#allocation4] sm:$0xff] 0.0
    %85 = vst [vmem:[#allocation5] sm:$0xff] 0.0
    %v86 = vld [vmem:[#allocation6] sm:$0xf]
    %v87 = vld [vmem:[#allocation6 + $0x4] sm:$0xf]
    %v88 = vld [vmem:[%s1] sm:$0x1]
    %s89 = smul.u32 0, 8
    %v90 = vlaneseq
    %v91 = vshrl.u32 %v90, 7
    %v92 = vstv %s89
    %v93 = vadd.s32 %v91, %v92
    %v94 = vlaneseq
    %v95 = vshrl.u32 %v94, 7
    %v96 = vsub.s32 0, %v95
    %v97 = vrot.slane %v88, %v96
    %vm98 = vcmp.eq.s32.totalorder %v93, %v97
    loop: start=0, step=1, limit=3
    $region42: #{tpu_custom_call.1} parent=1 // loop_pre_header
      _
    $region43: #{tpu_custom_call.1} parent=1 // loop_header
      %s100 = sphi 0, %s104
      %p101 = scmp.ge.s32.totalorder %s100, 3
    $region44: #{tpu_custom_call.1} parent=1 // loop_header_branch
      %103 = sbr.rel (%p101) target = $region48
    $region45: #{tpu_custom_call.1} parent=1 // loop_body
      %v105 = vld [vmem:[#allocation4] sm:$0xff]
      %v106 = vpack.c.bf16 %v105, %v105
      %v107 = vld [vmem:[#allocation5] sm:$0xff]
      %v108 = vpack.c.bf16 %v107, %v107
      %v109 = vld [vmem:[#allocation2] sm:$0xff]
      %v110 = vpack.c.bf16 %v109, %v109
      %v111 = vld [vmem:[#allocation9] sm:$0xff]
      %v112 = vld [vmem:[#allocation9 + $0x8] sm:$0xff]
      %v113 = vld [vmem:[#allocation9 + $0x10] sm:$0xff]
      %v114 = vld [vmem:[#allocation9 + $0x18] sm:$0xff]
      %v115 = vld [vmem:[#allocation9 + $0x20] sm:$0xff]
      %v116 = vld [vmem:[#allocation9 + $0x28] sm:$0xff]
      %v117 = vld [vmem:[#allocation9 + $0x30] sm:$0xff]
      %v118 = vld [vmem:[#allocation9 + $0x38] sm:$0xff]
      %v119 = vld [vmem:[#allocation9 + $0x40] sm:$0xff]
      %v120 = vld [vmem:[#allocation9 + $0x48] sm:$0xff]
      %v121 = vld [vmem:[#allocation9 + $0x50] sm:$0xff]
      %v122 = vld [vmem:[#allocation9 + $0x58] sm:$0xff]
      %v123 = vld [vmem:[#allocation9 + $0x60] sm:$0xff]
      %v124 = vld [vmem:[#allocation9 + $0x68] sm:$0xff]
      %v125 = vld [vmem:[#allocation9 + $0x70] sm:$0xff]
      %v126 = vld [vmem:[#allocation9 + $0x78] sm:$0xff]
      %v127 = vld [vmem:[#allocation9 + $0x80] sm:$0xff]
      %v128 = vld [vmem:[#allocation9 + $0x88] sm:$0xff]
      %v129 = vld [vmem:[#allocation9 + $0x90] sm:$0xff]
      %v130 = vld [vmem:[#allocation9 + $0x98] sm:$0xff]
      %v131 = vld [vmem:[#allocation9 + $0xa0] sm:$0xff]
      %v132 = vld [vmem:[#allocation9 + $0xa8] sm:$0xff]
      %v133 = vld [vmem:[#allocation9 + $0xb0] sm:$0xff]
      %v134 = vld [vmem:[#allocation9 + $0xb8] sm:$0xff]
      %v135 = vld [vmem:[#allocation9 + $0xc0] sm:$0xff]
      %v136 = vld [vmem:[#allocation9 + $0xc8] sm:$0xff]
      %v137 = vld [vmem:[#allocation9 + $0xd0] sm:$0xff]
      %v138 = vld [vmem:[#allocation9 + $0xd8] sm:$0xff]
      %v139 = vld [vmem:[#allocation9 + $0xe0] sm:$0xff]
      %v140 = vld [vmem:[#allocation9 + $0xe8] sm:$0xff]
      %v141 = vld [vmem:[#allocation9 + $0xf0] sm:$0xff]
      %v142 = vld [vmem:[#allocation9 + $0xf8] sm:$0xff]
      %v143 = vld [vmem:[#allocation12] sm:$0xff]
      %v144 = vld [vmem:[#allocation12 + $0x8] sm:$0xff]
      %v145 = vld [vmem:[#allocation12 + $0x10] sm:$0xff]
      %v146 = vld [vmem:[#allocation12 + $0x18] sm:$0xff]
      %v147 = vld [vmem:[#allocation12 + $0x20] sm:$0xff]
      %v148 = vld [vmem:[#allocation12 + $0x28] sm:$0xff]
      %v149 = vld [vmem:[#allocation12 + $0x30] sm:$0xff]
      %v150 = vld [vmem:[#allocation12 + $0x38] sm:$0xff]
      %v151 = vld [vmem:[#allocation12 + $0x40] sm:$0xff]
      %v152 = vld [vmem:[#allocation12 + $0x48] sm:$0xff]
      %v153 = vld [vmem:[#allocation12 + $0x50] sm:$0xff]
      %v154 = vld [vmem:[#allocation12 + $0x58] sm:$0xff]
      %v155 = vld [vmem:[#allocation12 + $0x60] sm:$0xff]
      %v156 = vld [vmem:[#allocation12 + $0x68] sm:$0xff]
      %v157 = vld [vmem:[#allocation12 + $0x70] sm:$0xff]
      %v158 = vld [vmem:[#allocation12 + $0x78] sm:$0xff]
      %v159 = vld [vmem:[#allocation12 + $0x80] sm:$0xff]
      %v160 = vld [vmem:[#allocation12 + $0x88] sm:$0xff]
      %v161 = vld [vmem:[#allocation12 + $0x90] sm:$0xff]
      %v162 = vld [vmem:[#allocation12 + $0x98] sm:$0xff]
      %v163 = vld [vmem:[#allocation12 + $0xa0] sm:$0xff]
      %v164 = vld [vmem:[#allocation12 + $0xa8] sm:$0xff]
      %v165 = vld [vmem:[#allocation12 + $0xb0] sm:$0xff]
      %v166 = vld [vmem:[#allocation12 + $0xb8] sm:$0xff]
      %v167 = vld [vmem:[#allocation12 + $0xc0] sm:$0xff]
      %v168 = vld [vmem:[#allocation12 + $0xc8] sm:$0xff]
      %v169 = vld [vmem:[#allocation12 + $0xd0] sm:$0xff]
      %v170 = vld [vmem:[#allocation12 + $0xd8] sm:$0xff]
      %v171 = vld [vmem:[#allocation12 + $0xe0] sm:$0xff]
      %v172 = vld [vmem:[#allocation12 + $0xe8] sm:$0xff]
      %v173 = vld [vmem:[#allocation12 + $0xf0] sm:$0xff]
      %v174 = vld [vmem:[#allocation12 + $0xf8] sm:$0xff]
      %v207 = vunpack.c.l.b16 %v143
      %v208 = vunpack.c.h.b16 %v143
      %v209 = vunpack.c.l.b16 %v144
      %v210 = vunpack.c.h.b16 %v144
      %v211 = vunpack.c.l.b16 %v145
      %v212 = vunpack.c.h.b16 %v145
      %v213 = vunpack.c.l.b16 %v146
      %v214 = vunpack.c.h.b16 %v146
      %v215 = vunpack.c.l.b16 %v147
      %v216 = vunpack.c.h.b16 %v147
      %v217 = vunpack.c.l.b16 %v148
      %v218 = vunpack.c.h.b16 %v148
      %v219 = vunpack.c.l.b16 %v149
      %v220 = vunpack.c.h.b16 %v149
      %v221 = vunpack.c.l.b16 %v150
      %v222 = vunpack.c.h.b16 %v150
      %v223 = vunpack.c.l.b16 %v151
      %v224 = vunpack.c.h.b16 %v151
      %v225 = vunpack.c.l.b16 %v152
      %v226 = vunpack.c.h.b16 %v152
      %v227 = vunpack.c.l.b16 %v153
      %v228 = vunpack.c.h.b16 %v153
      %v229 = vunpack.c.l.b16 %v154
      %v230 = vunpack.c.h.b16 %v154
      %v231 = vunpack.c.l.b16 %v155
      %v232 = vunpack.c.h.b16 %v155
      %v233 = vunpack.c.l.b16 %v156
      %v234 = vunpack.c.h.b16 %v156
      %v235 = vunpack.c.l.b16 %v157
      %v236 = vunpack.c.h.b16 %v157
      %v237 = vunpack.c.l.b16 %v158
      %v238 = vunpack.c.h.b16 %v158
      %v239 = vunpack.c.l.b16 %v159
      %v240 = vunpack.c.h.b16 %v159
      %v241 = vunpack.c.l.b16 %v160
      %v242 = vunpack.c.h.b16 %v160
      %v243 = vunpack.c.l.b16 %v161
      %v244 = vunpack.c.h.b16 %v161
      %v245 = vunpack.c.l.b16 %v162
      %v246 = vunpack.c.h.b16 %v162
      %v247 = vunpack.c.l.b16 %v163
      %v248 = vunpack.c.h.b16 %v163
      %v249 = vunpack.c.l.b16 %v164
      %v250 = vunpack.c.h.b16 %v164
      %v251 = vunpack.c.l.b16 %v165
      %v252 = vunpack.c.h.b16 %v165
      %v253 = vunpack.c.l.b16 %v166
      %v254 = vunpack.c.h.b16 %v166
      %v255 = vunpack.c.l.b16 %v167
      %v256 = vunpack.c.h.b16 %v167
      %v257 = vunpack.c.l.b16 %v168
      %v258 = vunpack.c.h.b16 %v168
      %v259 = vunpack.c.l.b16 %v169
      %v260 = vunpack.c.h.b16 %v169
      %v261 = vunpack.c.l.b16 %v170
      %v262 = vunpack.c.h.b16 %v170
      %v263 = vunpack.c.l.b16 %v171
      %v264 = vunpack.c.h.b16 %v171
      %v265 = vunpack.c.l.b16 %v172
      %v266 = vunpack.c.h.b16 %v172
      %v267 = vunpack.c.l.b16 %v173
      %v268 = vunpack.c.h.b16 %v173
      %v269 = vunpack.c.l.b16 %v174
      %v270 = vunpack.c.h.b16 %v174
      %v271 = vpack.c.b16 %v211, %v207
      %v272 = vpack.c.b16 %v212, %v208
      %v273 = vpack.c.b16 %v213, %v209
      %v274 = vpack.c.b16 %v214, %v210
      %v275 = vpack.c.b16 %v219, %v215
      %v276 = vpack.c.b16 %v220, %v216
      %v277 = vpack.c.b16 %v221, %v217
      %v278 = vpack.c.b16 %v222, %v218
      %v279 = vpack.c.b16 %v227, %v223
      %v280 = vpack.c.b16 %v228, %v224
      %v281 = vpack.c.b16 %v229, %v225
      %v282 = vpack.c.b16 %v230, %v226
      %v283 = vpack.c.b16 %v235, %v231
      %v284 = vpack.c.b16 %v236, %v232
      %v285 = vpack.c.b16 %v237, %v233
      %v286 = vpack.c.b16 %v238, %v234
      %v287 = vpack.c.b16 %v243, %v239
      %v288 = vpack.c.b16 %v244, %v240
      %v289 = vpack.c.b16 %v245, %v241
      %v290 = vpack.c.b16 %v246, %v242
      %v291 = vpack.c.b16 %v251, %v247
      %v292 = vpack.c.b16 %v252, %v248
      %v293 = vpack.c.b16 %v253, %v249
      %v294 = vpack.c.b16 %v254, %v250
      %v295 = vpack.c.b16 %v259, %v255
      %v296 = vpack.c.b16 %v260, %v256
      %v297 = vpack.c.b16 %v261, %v257
      %v298 = vpack.c.b16 %v262, %v258
      %v299 = vpack.c.b16 %v267, %v263
      %v300 = vpack.c.b16 %v268, %v264
      %v301 = vpack.c.b16 %v269, %v265
      %v302 = vpack.c.b16 %v270, %v266
      %335 = vmatprep.subr.bf16.mxu0 %v300
      %336 = vmatpush1.bf16.msra.mxu0 %v299
      %337 = vmatprep.subr.bf16.mxu0 %v296
      %338 = vmatpush1.bf16.msra.mxu0 %v295
      %339 = vmatprep.subr.bf16.mxu0 %v292
      %340 = vmatpush1.bf16.msra.mxu0 %v291
      %341 = vmatprep.subr.bf16.mxu0 %v288
      %342 = vmatpush1.bf16.msra.mxu0 %v287
      %343 = vmatprep.subr.bf16.mxu0 %v284
      %344 = vmatpush1.bf16.msra.mxu0 %v283
      %345 = vmatprep.subr.bf16.mxu0 %v280
      %346 = vmatpush1.bf16.msra.mxu0 %v279
      %347 = vmatprep.subr.bf16.mxu0 %v276
      %348 = vmatpush1.bf16.msra.mxu0 %v275
      %349 = vmatprep.subr.bf16.mxu0 %v272
      %350 = vmatpush1.bf16.msra.mxu0 %v271
      %351 = vmatprep.subr.bf16.mxu0 0
      %352 = vmatpush2.bf16.msra.mxu0 0
      %353 = vmatprep.subr.bf16.mxu0 0
      %354 = vmatpush2.bf16.msra.mxu0 0
      %355 = vmatprep.subr.bf16.mxu0 0
      %356 = vmatpush2.bf16.msra.mxu0 0
      %357 = vmatprep.subr.bf16.mxu0 0
      %358 = vmatpush2.bf16.msra.mxu0 0
      %359 = vmatprep.subr.bf16.mxu0 0
      %360 = vmatpush2.bf16.msra.mxu0 0
      %361 = vmatprep.subr.bf16.mxu0 0
      %362 = vmatpush2.bf16.msra.mxu0 0
      %363 = vmatprep.subr.bf16.mxu0 0
      %364 = vmatpush2.bf16.msra.mxu0 0
      %365 = vmatprep.subr.bf16.mxu0 0
      %366 = vmatpush2.bf16.msra.mxu0 0
      %367 = vmatprep.mubr.bf16.mxu0 0
      %368 = vmatmul.mubr.bf16.gmra.mxu0 %v110
      %v369 = vpop.f32.mrf.mxu0
      %v370 = vadd.f32 0.0, %v369
      %v371 = vpop.f32.mrf.mxu0
      %v372 = vadd.f32 0.0, %v371
      %v373 = vpop.f32.mrf.mxu0
      %v374 = vpop.f32.mrf.mxu0
      %375 = vdwg.mxu0
      %376 = vmatprep.subr.bf16.mxu0 %v302
      %377 = vmatpush1.bf16.msra.mxu0 %v301
      %378 = vmatprep.subr.bf16.mxu0 %v298
      %379 = vmatpush1.bf16.msra.mxu0 %v297
      %380 = vmatprep.subr.bf16.mxu0 %v294
      %381 = vmatpush1.bf16.msra.mxu0 %v293
      %382 = vmatprep.subr.bf16.mxu0 %v290
      %383 = vmatpush1.bf16.msra.mxu0 %v289
      %384 = vmatprep.subr.bf16.mxu0 %v286
      %385 = vmatpush1.bf16.msra.mxu0 %v285
      %386 = vmatprep.subr.bf16.mxu0 %v282
      %387 = vmatpush1.bf16.msra.mxu0 %v281
      %388 = vmatprep.subr.bf16.mxu0 %v278
      %389 = vmatpush1.bf16.msra.mxu0 %v277
      %390 = vmatprep.subr.bf16.mxu0 %v274
      %391 = vmatpush1.bf16.msra.mxu0 %v273
      %392 = vmatprep.subr.bf16.mxu0 0
      %393 = vmatpush2.bf16.msra.mxu0 0
      %394 = vmatprep.subr.bf16.mxu0 0
      %395 = vmatpush2.bf16.msra.mxu0 0
      %396 = vmatprep.subr.bf16.mxu0 0
      %397 = vmatpush2.bf16.msra.mxu0 0
      %398 = vmatprep.subr.bf16.mxu0 0
      %399 = vmatpush2.bf16.msra.mxu0 0
      %400 = vmatprep.subr.bf16.mxu0 0
      %401 = vmatpush2.bf16.msra.mxu0 0
      %402 = vmatprep.subr.bf16.mxu0 0
      %403 = vmatpush2.bf16.msra.mxu0 0
      %404 = vmatprep.subr.bf16.mxu0 0
      %405 = vmatpush2.bf16.msra.mxu0 0
      %406 = vmatprep.subr.bf16.mxu0 0
      %407 = vmatpush2.bf16.msra.mxu0 0
      %408 = vmatprep.mubr.bf16.mxu0 0
      %409 = vmatmul.mubr.bf16.gmra.mxu0 %v110
      %v410 = vpop.f32.mrf.mxu0
      %v411 = vadd.f32 0.0, %v410
      %v412 = vpop.f32.mrf.mxu0
      %v413 = vadd.f32 0.0, %v412
      %v414 = vpop.f32.mrf.mxu0
      %v415 = vpop.f32.mrf.mxu0
      %416 = vdwg.mxu0
      %v449 = vunpack.c.l.b16 %v111
      %v450 = vunpack.c.h.b16 %v111
      %v451 = vunpack.c.l.b16 %v112
      %v452 = vunpack.c.h.b16 %v112
      %v453 = vunpack.c.l.b16 %v113
      %v454 = vunpack.c.h.b16 %v113
      %v455 = vunpack.c.l.b16 %v114
      %v456 = vunpack.c.h.b16 %v114
      %v457 = vunpack.c.l.b16 %v115
      %v458 = vunpack.c.h.b16 %v115
      %v459 = vunpack.c.l.b16 %v116
      %v460 = vunpack.c.h.b16 %v116
      %v461 = vunpack.c.l.b16 %v117
      %v462 = vunpack.c.h.b16 %v117
      %v463 = vunpack.c.l.b16 %v118
      %v464 = vunpack.c.h.b16 %v118
      %v465 = vunpack.c.l.b16 %v119
      %v466 = vunpack.c.h.b16 %v119
      %v467 = vunpack.c.l.b16 %v120
      %v468 = vunpack.c.h.b16 %v120
      %v469 = vunpack.c.l.b16 %v121
      %v470 = vunpack.c.h.b16 %v121
      %v471 = vunpack.c.l.b16 %v122
      %v472 = vunpack.c.h.b16 %v122
      %v473 = vunpack.c.l.b16 %v123
      %v474 = vunpack.c.h.b16 %v123
      %v475 = vunpack.c.l.b16 %v124
      %v476 = vunpack.c.h.b16 %v124
      %v477 = vunpack.c.l.b16 %v125
      %v478 = vunpack.c.h.b16 %v125
      %v479 = vunpack.c.l.b16 %v126
      %v480 = vunpack.c.h.b16 %v126
      %v481 = vunpack.c.l.b16 %v127
      %v482 = vunpack.c.h.b16 %v127
      %v483 = vunpack.c.l.b16 %v128
      %v484 = vunpack.c.h.b16 %v128
      %v485 = vunpack.c.l.b16 %v129
      %v486 = vunpack.c.h.b16 %v129
      %v487 = vunpack.c.l.b16 %v130
      %v488 = vunpack.c.h.b16 %v130
      %v489 = vunpack.c.l.b16 %v131
      %v490 = vunpack.c.h.b16 %v131
      %v491 = vunpack.c.l.b16 %v132
      %v492 = vunpack.c.h.b16 %v132
      %v493 = vunpack.c.l.b16 %v133
      %v494 = vunpack.c.h.b16 %v133
      %v495 = vunpack.c.l.b16 %v134
      %v496 = vunpack.c.h.b16 %v134
      %v497 = vunpack.c.l.b16 %v135
      %v498 = vunpack.c.h.b16 %v135
      %v499 = vunpack.c.l.b16 %v136
      %v500 = vunpack.c.h.b16 %v136
      %v501 = vunpack.c.l.b16 %v137
      %v502 = vunpack.c.h.b16 %v137
      %v503 = vunpack.c.l.b16 %v138
      %v504 = vunpack.c.h.b16 %v138
      %v505 = vunpack.c.l.b16 %v139
      %v506 = vunpack.c.h.b16 %v139
      %v507 = vunpack.c.l.b16 %v140
      %v508 = vunpack.c.h.b16 %v140
      %v509 = vunpack.c.l.b16 %v141
      %v510 = vunpack.c.h.b16 %v141
      %v511 = vunpack.c.l.b16 %v142
      %v512 = vunpack.c.h.b16 %v142
      %v513 = vpack.c.b16 %v453, %v449
      %v514 = vpack.c.b16 %v454, %v450
      %v515 = vpack.c.b16 %v455, %v451
      %v516 = vpack.c.b16 %v456, %v452
      %v517 = vpack.c.b16 %v461, %v457
      %v518 = vpack.c.b16 %v462, %v458
      %v519 = vpack.c.b16 %v463, %v459
      %v520 = vpack.c.b16 %v464, %v460
      %v521 = vpack.c.b16 %v469, %v465
      %v522 = vpack.c.b16 %v470, %v466
      %v523 = vpack.c.b16 %v471, %v467
      %v524 = vpack.c.b16 %v472, %v468
      %v525 = vpack.c.b16 %v477, %v473
      %v526 = vpack.c.b16 %v478, %v474
      %v527 = vpack.c.b16 %v479, %v475
      %v528 = vpack.c.b16 %v480, %v476
      %v529 = vpack.c.b16 %v485, %v481
      %v530 = vpack.c.b16 %v486, %v482
      %v531 = vpack.c.b16 %v487, %v483
      %v532 = vpack.c.b16 %v488, %v484
      %v533 = vpack.c.b16 %v493, %v489
      %v534 = vpack.c.b16 %v494, %v490
      %v535 = vpack.c.b16 %v495, %v491
      %v536 = vpack.c.b16 %v496, %v492
      %v537 = vpack.c.b16 %v501, %v497
      %v538 = vpack.c.b16 %v502, %v498
      %v539 = vpack.c.b16 %v503, %v499
      %v540 = vpack.c.b16 %v504, %v500
      %v541 = vpack.c.b16 %v509, %v505
      %v542 = vpack.c.b16 %v510, %v506
      %v543 = vpack.c.b16 %v511, %v507
      %v544 = vpack.c.b16 %v512, %v508
      %577 = vmatprep.subr.bf16.mxu0 %v542
      %578 = vmatpush1.bf16.msra.mxu0 %v541
      %579 = vmatprep.subr.bf16.mxu0 %v538
      %580 = vmatpush1.bf16.msra.mxu0 %v537
      %581 = vmatprep.subr.bf16.mxu0 %v534
      %582 = vmatpush1.bf16.msra.mxu0 %v533
      %583 = vmatprep.subr.bf16.mxu0 %v530
      %584 = vmatpush1.bf16.msra.mxu0 %v529
      %585 = vmatprep.subr.bf16.mxu0 %v526
      %586 = vmatpush1.bf16.msra.mxu0 %v525
      %587 = vmatprep.subr.bf16.mxu0 %v522
      %588 = vmatpush1.bf16.msra.mxu0 %v521
      %589 = vmatprep.subr.bf16.mxu0 %v518
      %590 = vmatpush1.bf16.msra.mxu0 %v517
      %591 = vmatprep.subr.bf16.mxu0 %v514
      %592 = vmatpush1.bf16.msra.mxu0 %v513
      %593 = vmatprep.subr.bf16.mxu0 0
      %594 = vmatpush2.bf16.msra.mxu0 0
      %595 = vmatprep.subr.bf16.mxu0 0
      %596 = vmatpush2.bf16.msra.mxu0 0
      %597 = vmatprep.subr.bf16.mxu0 0
      %598 = vmatpush2.bf16.msra.mxu0 0
      %599 = vmatprep.subr.bf16.mxu0 0
      %600 = vmatpush2.bf16.msra.mxu0 0
      %601 = vmatprep.subr.bf16.mxu0 0
      %602 = vmatpush2.bf16.msra.mxu0 0
      %603 = vmatprep.subr.bf16.mxu0 0
      %604 = vmatpush2.bf16.msra.mxu0 0
      %605 = vmatprep.subr.bf16.mxu0 0
      %606 = vmatpush2.bf16.msra.mxu0 0
      %607 = vmatprep.subr.bf16.mxu0 0
      %608 = vmatpush2.bf16.msra.mxu0 0
      %609 = vmatprep.mubr.bf16.mxu0 0
      %610 = vmatmul.mubr.bf16.gmra.mxu0 %v106
      %v611 = vpop.f32.mrf.mxu0
      %v612 = vadd.f32 %v370, %v611
      %v613 = vpop.f32.mrf.mxu0
      %v614 = vadd.f32 %v372, %v613
      %v615 = vpop.f32.mrf.mxu0
      %v616 = vpop.f32.mrf.mxu0
      %617 = vdwg.mxu0
      %618 = vmatprep.subr.bf16.mxu0 %v544
      %619 = vmatpush1.bf16.msra.mxu0 %v543
      %620 = vmatprep.subr.bf16.mxu0 %v540
      %621 = vmatpush1.bf16.msra.mxu0 %v539
      %622 = vmatprep.subr.bf16.mxu0 %v536
      %623 = vmatpush1.bf16.msra.mxu0 %v535
      %624 = vmatprep.subr.bf16.mxu0 %v532
      %625 = vmatpush1.bf16.msra.mxu0 %v531
      %626 = vmatprep.subr.bf16.mxu0 %v528
      %627 = vmatpush1.bf16.msra.mxu0 %v527
      %628 = vmatprep.subr.bf16.mxu0 %v524
      %629 = vmatpush1.bf16.msra.mxu0 %v523
      %630 = vmatprep.subr.bf16.mxu0 %v520
      %631 = vmatpush1.bf16.msra.mxu0 %v519
      %632 = vmatprep.subr.bf16.mxu0 %v516
      %633 = vmatpush1.bf16.msra.mxu0 %v515
      %634 = vmatprep.subr.bf16.mxu0 0
      %635 = vmatpush2.bf16.msra.mxu0 0
      %636 = vmatprep.subr.bf16.mxu0 0
      %637 = vmatpush2.bf16.msra.mxu0 0
      %638 = vmatprep.subr.bf16.mxu0 0
      %639 = vmatpush2.bf16.msra.mxu0 0
      %640 = vmatprep.subr.bf16.mxu0 0
      %641 = vmatpush2.bf16.msra.mxu0 0
      %642 = vmatprep.subr.bf16.mxu0 0
      %643 = vmatpush2.bf16.msra.mxu0 0
      %644 = vmatprep.subr.bf16.mxu0 0
      %645 = vmatpush2.bf16.msra.mxu0 0
      %646 = vmatprep.subr.bf16.mxu0 0
      %647 = vmatpush2.bf16.msra.mxu0 0
      %648 = vmatprep.subr.bf16.mxu0 0
      %649 = vmatpush2.bf16.msra.mxu0 0
      %650 = vmatprep.mubr.bf16.mxu0 0
      %651 = vmatmul.mubr.bf16.gmra.mxu0 %v106
      %v652 = vpop.f32.mrf.mxu0
      %v653 = vadd.f32 %v411, %v652
      %v654 = vpop.f32.mrf.mxu0
      %v655 = vadd.f32 %v413, %v654
      %v656 = vpop.f32.mrf.mxu0
      %v657 = vpop.f32.mrf.mxu0
      %658 = vdwg.mxu0
      %v659 = vld [vmem:[#allocation11] sm:$0xff]
      %v660 = vld [vmem:[#allocation11 + $0x8] sm:$0xff]
      %v661 = vld [vmem:[#allocation11 + $0x10] sm:$0xff]
      %v662 = vld [vmem:[#allocation11 + $0x18] sm:$0xff]
      %v663 = vld [vmem:[#allocation11 + $0x20] sm:$0xff]
      %v664 = vld [vmem:[#allocation11 + $0x28] sm:$0xff]
      %v665 = vld [vmem:[#allocation11 + $0x30] sm:$0xff]
      %v666 = vld [vmem:[#allocation11 + $0x38] sm:$0xff]
      %v667 = vld [vmem:[#allocation11 + $0x40] sm:$0xff]
      %v668 = vld [vmem:[#allocation11 + $0x48] sm:$0xff]
      %v669 = vld [vmem:[#allocation11 + $0x50] sm:$0xff]
      %v670 = vld [vmem:[#allocation11 + $0x58] sm:$0xff]
      %v671 = vld [vmem:[#allocation11 + $0x60] sm:$0xff]
      %v672 = vld [vmem:[#allocation11 + $0x68] sm:$0xff]
      %v673 = vld [vmem:[#allocation11 + $0x70] sm:$0xff]
      %v674 = vld [vmem:[#allocation11 + $0x78] sm:$0xff]
      %v675 = vld [vmem:[#allocation11 + $0x80] sm:$0xff]
      %v676 = vld [vmem:[#allocation11 + $0x88] sm:$0xff]
      %v677 = vld [vmem:[#allocation11 + $0x90] sm:$0xff]
      %v678 = vld [vmem:[#allocation11 + $0x98] sm:$0xff]
      %v679 = vld [vmem:[#allocation11 + $0xa0] sm:$0xff]
      %v680 = vld [vmem:[#allocation11 + $0xa8] sm:$0xff]
      %v681 = vld [vmem:[#allocation11 + $0xb0] sm:$0xff]
      %v682 = vld [vmem:[#allocation11 + $0xb8] sm:$0xff]
      %v683 = vld [vmem:[#allocation11 + $0xc0] sm:$0xff]
      %v684 = vld [vmem:[#allocation11 + $0xc8] sm:$0xff]
      %v685 = vld [vmem:[#allocation11 + $0xd0] sm:$0xff]
      %v686 = vld [vmem:[#allocation11 + $0xd8] sm:$0xff]
      %v687 = vld [vmem:[#allocation11 + $0xe0] sm:$0xff]
      %v688 = vld [vmem:[#allocation11 + $0xe8] sm:$0xff]
      %v689 = vld [vmem:[#allocation11 + $0xf0] sm:$0xff]
      %v690 = vld [vmem:[#allocation11 + $0xf8] sm:$0xff]
      %v723 = vunpack.c.l.b16 %v659
      %v724 = vunpack.c.h.b16 %v659
      %v725 = vunpack.c.l.b16 %v660
      %v726 = vunpack.c.h.b16 %v660
      %v727 = vunpack.c.l.b16 %v661
      %v728 = vunpack.c.h.b16 %v661
      %v729 = vunpack.c.l.b16 %v662
      %v730 = vunpack.c.h.b16 %v662
      %v731 = vunpack.c.l.b16 %v663
      %v732 = vunpack.c.h.b16 %v663
      %v733 = vunpack.c.l.b16 %v664
      %v734 = vunpack.c.h.b16 %v664
      %v735 = vunpack.c.l.b16 %v665
      %v736 = vunpack.c.h.b16 %v665
      %v737 = vunpack.c.l.b16 %v666
      %v738 = vunpack.c.h.b16 %v666
      %v739 = vunpack.c.l.b16 %v667
      %v740 = vunpack.c.h.b16 %v667
      %v741 = vunpack.c.l.b16 %v668
      %v742 = vunpack.c.h.b16 %v668
      %v743 = vunpack.c.l.b16 %v669
      %v744 = vunpack.c.h.b16 %v669
      %v745 = vunpack.c.l.b16 %v670
      %v746 = vunpack.c.h.b16 %v670
      %v747 = vunpack.c.l.b16 %v671
      %v748 = vunpack.c.h.b16 %v671
      %v749 = vunpack.c.l.b16 %v672
      %v750 = vunpack.c.h.b16 %v672
      %v751 = vunpack.c.l.b16 %v673
      %v752 = vunpack.c.h.b16 %v673
      %v753 = vunpack.c.l.b16 %v674
      %v754 = vunpack.c.h.b16 %v674
      %v755 = vunpack.c.l.b16 %v675
      %v756 = vunpack.c.h.b16 %v675
      %v757 = vunpack.c.l.b16 %v676
      %v758 = vunpack.c.h.b16 %v676
      %v759 = vunpack.c.l.b16 %v677
      %v760 = vunpack.c.h.b16 %v677
      %v761 = vunpack.c.l.b16 %v678
      %v762 = vunpack.c.h.b16 %v678
      %v763 = vunpack.c.l.b16 %v679
      %v764 = vunpack.c.h.b16 %v679
      %v765 = vunpack.c.l.b16 %v680
      %v766 = vunpack.c.h.b16 %v680
      %v767 = vunpack.c.l.b16 %v681
      %v768 = vunpack.c.h.b16 %v681
      %v769 = vunpack.c.l.b16 %v682
      %v770 = vunpack.c.h.b16 %v682
      %v771 = vunpack.c.l.b16 %v683
      %v772 = vunpack.c.h.b16 %v683
      %v773 = vunpack.c.l.b16 %v684
      %v774 = vunpack.c.h.b16 %v684
      %v775 = vunpack.c.l.b16 %v685
      %v776 = vunpack.c.h.b16 %v685
      %v777 = vunpack.c.l.b16 %v686
      %v778 = vunpack.c.h.b16 %v686
      %v779 = vunpack.c.l.b16 %v687
      %v780 = vunpack.c.h.b16 %v687
      %v781 = vunpack.c.l.b16 %v688
      %v782 = vunpack.c.h.b16 %v688
      %v783 = vunpack.c.l.b16 %v689
      %v784 = vunpack.c.h.b16 %v689
      %v785 = vunpack.c.l.b16 %v690
      %v786 = vunpack.c.h.b16 %v690
      %v787 = vpack.c.b16 %v727, %v723
      %v788 = vpack.c.b16 %v728, %v724
      %v789 = vpack.c.b16 %v729, %v725
      %v790 = vpack.c.b16 %v730, %v726
      %v791 = vpack.c.b16 %v735, %v731
      %v792 = vpack.c.b16 %v736, %v732
      %v793 = vpack.c.b16 %v737, %v733
      %v794 = vpack.c.b16 %v738, %v734
      %v795 = vpack.c.b16 %v743, %v739
      %v796 = vpack.c.b16 %v744, %v740
      %v797 = vpack.c.b16 %v745, %v741
      %v798 = vpack.c.b16 %v746, %v742
      %v799 = vpack.c.b16 %v751, %v747
      %v800 = vpack.c.b16 %v752, %v748
      %v801 = vpack.c.b16 %v753, %v749
      %v802 = vpack.c.b16 %v754, %v750
      %v803 = vpack.c.b16 %v759, %v755
      %v804 = vpack.c.b16 %v760, %v756
      %v805 = vpack.c.b16 %v761, %v757
      %v806 = vpack.c.b16 %v762, %v758
      %v807 = vpack.c.b16 %v767, %v763
      %v808 = vpack.c.b16 %v768, %v764
      %v809 = vpack.c.b16 %v769, %v765
      %v810 = vpack.c.b16 %v770, %v766
      %v811 = vpack.c.b16 %v775, %v771
      %v812 = vpack.c.b16 %v776, %v772
      %v813 = vpack.c.b16 %v777, %v773
      %v814 = vpack.c.b16 %v778, %v774
      %v815 = vpack.c.b16 %v783, %v779
      %v816 = vpack.c.b16 %v784, %v780
      %v817 = vpack.c.b16 %v785, %v781
      %v818 = vpack.c.b16 %v786, %v782
      %851 = vmatprep.subr.bf16.mxu0 %v816
      %852 = vmatpush1.bf16.msra.mxu0 %v815
      %853 = vmatprep.subr.bf16.mxu0 %v812
      %854 = vmatpush1.bf16.msra.mxu0 %v811
      %855 = vmatprep.subr.bf16.mxu0 %v808
      %856 = vmatpush1.bf16.msra.mxu0 %v807
      %857 = vmatprep.subr.bf16.mxu0 %v804
      %858 = vmatpush1.bf16.msra.mxu0 %v803
      %859 = vmatprep.subr.bf16.mxu0 %v800
      %860 = vmatpush1.bf16.msra.mxu0 %v799
      %861 = vmatprep.subr.bf16.mxu0 %v796
      %862 = vmatpush1.bf16.msra.mxu0 %v795
      %863 = vmatprep.subr.bf16.mxu0 %v792
      %864 = vmatpush1.bf16.msra.mxu0 %v791
      %865 = vmatprep.subr.bf16.mxu0 %v788
      %866 = vmatpush1.bf16.msra.mxu0 %v787
      %867 = vmatprep.subr.bf16.mxu0 0
      %868 = vmatpush2.bf16.msra.mxu0 0
      %869 = vmatprep.subr.bf16.mxu0 0
      %870 = vmatpush2.bf16.msra.mxu0 0
      %871 = vmatprep.subr.bf16.mxu0 0
      %872 = vmatpush2.bf16.msra.mxu0 0
      %873 = vmatprep.subr.bf16.mxu0 0
      %874 = vmatpush2.bf16.msra.mxu0 0
      %875 = vmatprep.subr.bf16.mxu0 0
      %876 = vmatpush2.bf16.msra.mxu0 0
      %877 = vmatprep.subr.bf16.mxu0 0
      %878 = vmatpush2.bf16.msra.mxu0 0
      %879 = vmatprep.subr.bf16.mxu0 0
      %880 = vmatpush2.bf16.msra.mxu0 0
      %881 = vmatprep.subr.bf16.mxu0 0
      %882 = vmatpush2.bf16.msra.mxu0 0
      %883 = vmatprep.mubr.bf16.mxu0 0
      %884 = vmatmul.mubr.bf16.gmra.mxu0 %v108
      %v885 = vpop.f32.mrf.mxu0
      %v886 = vadd.f32 0.0, %v885
      %v887 = vpop.f32.mrf.mxu0
      %v888 = vadd.f32 0.0, %v887
      %v889 = vpop.f32.mrf.mxu0
      %v890 = vpop.f32.mrf.mxu0
      %891 = vdwg.mxu0
      %892 = vmatprep.subr.bf16.mxu0 %v818
      %893 = vmatpush1.bf16.msra.mxu0 %v817
      %894 = vmatprep.subr.bf16.mxu0 %v814
      %895 = vmatpush1.bf16.msra.mxu0 %v813
      %896 = vmatprep.subr.bf16.mxu0 %v810
      %897 = vmatpush1.bf16.msra.mxu0 %v809
      %898 = vmatprep.subr.bf16.mxu0 %v806
      %899 = vmatpush1.bf16.msra.mxu0 %v805
      %900 = vmatprep.subr.bf16.mxu0 %v802
      %901 = vmatpush1.bf16.msra.mxu0 %v801
      %902 = vmatprep.subr.bf16.mxu0 %v798
      %903 = vmatpush1.bf16.msra.mxu0 %v797
      %904 = vmatprep.subr.bf16.mxu0 %v794
      %905 = vmatpush1.bf16.msra.mxu0 %v793
      %906 = vmatprep.subr.bf16.mxu0 %v790
      %907 = vmatpush1.bf16.msra.mxu0 %v789
      %908 = vmatprep.subr.bf16.mxu0 0
      %909 = vmatpush2.bf16.msra.mxu0 0
      %910 = vmatprep.subr.bf16.mxu0 0
      %911 = vmatpush2.bf16.msra.mxu0 0
      %912 = vmatprep.subr.bf16.mxu0 0
      %913 = vmatpush2.bf16.msra.mxu0 0
      %914 = vmatprep.subr.bf16.mxu0 0
      %915 = vmatpush2.bf16.msra.mxu0 0
      %916 = vmatprep.subr.bf16.mxu0 0
      %917 = vmatpush2.bf16.msra.mxu0 0
      %918 = vmatprep.subr.bf16.mxu0 0
      %919 = vmatpush2.bf16.msra.mxu0 0
      %920 = vmatprep.subr.bf16.mxu0 0
      %921 = vmatpush2.bf16.msra.mxu0 0
      %922 = vmatprep.subr.bf16.mxu0 0
      %923 = vmatpush2.bf16.msra.mxu0 0
      %924 = vmatprep.mubr.bf16.mxu0 0
      %925 = vmatmul.mubr.bf16.gmra.mxu0 %v108
      %v926 = vpop.f32.mrf.mxu0
      %v927 = vadd.f32 0.0, %v926
      %v928 = vpop.f32.mrf.mxu0
      %v929 = vadd.f32 0.0, %v928
      %v930 = vpop.f32.mrf.mxu0
      %v931 = vpop.f32.mrf.mxu0
      %932 = vdwg.mxu0
      %v933 = vadd.f32 %v612, %v886
      %v934 = vadd.f32 %v614, %v888
      %v935 = vadd.f32 %v653, %v927
      %v936 = vadd.f32 %v655, %v929
      %v937 = vld [vmem:[%s5] sm:$0xf]
      %v939 = vlaneseq
      %v940 = vshrl.u32 %v939, 7
      %v941 = vsub.s32 0, %v940
      %v942 = vrot.slane %v937, %v941
      %v943 = vlaneseq
      %v944 = vshrl.u32 %v943, 7
      %v945 = vsub.s32 1, %v944
      %v946 = vrot.slane %v937, %v945
      %v947 = vlaneseq
      %v948 = vshrl.u32 %v947, 7
      %v949 = vsub.s32 2, %v948
      %v950 = vrot.slane %v937, %v949
      %v951 = vlaneseq
      %v952 = vshrl.u32 %v951, 7
      %v953 = vsub.s32 3, %v952
      %v954 = vrot.slane %v937, %v953
      %v959 = vadd.f32 %v933, %v942
      %v960 = vadd.f32 %v934, %v946
      %v961 = vadd.f32 %v935, %v950
      %v962 = vadd.f32 %v936, %v954
      %v963 = vxor.u32 %v959, 2147483648
      %v964 = vmul.f32 %v963, 1.442695
      %v965 = vpow.pop %v964
      %v966 = vadd.f32 %v965, 1.0
      %v967 = vrcp.pop %v966
      %v968 = vmul.f32 1.0, %v967
      %v969 = vtanh.pop %v961
      %v970 = vmul.f32 %v968, %v969
      %v971 = vxor.u32 %v960, 2147483648
      %v972 = vmul.f32 %v971, 1.442695
      %v973 = vpow.pop %v972
      %v974 = vadd.f32 %v973, 1.0
      %v975 = vrcp.pop %v974
      %v976 = vmul.f32 1.0, %v975
      %v977 = vld [vmem:[#allocation3] sm:$0xff]
      %v978 = vmul.f32 %v976, %v977
      %v979 = vadd.f32 %v978, %v970
      %v980 = vxor.u32 %v962, 2147483648
      %v981 = vmul.f32 %v980, 1.442695
      %v982 = vpow.pop %v981
      %v983 = vadd.f32 %v982, 1.0
      %v984 = vrcp.pop %v983
      %v985 = vmul.f32 1.0, %v984
      %v986 = vtanh.pop %v979
      %v987 = vmul.f32 %v985, %v986
      %988 = vst [vmem:[#allocation3] sm:$0xff] %v979
      %989 = vst [vmem:[#allocation2] sm:$0xff] %v987
      %v990 = vpack.c.bf16 %v987, %v987
      %s991 = scalar_lea.vmem [#allocation2], 8
      %v992 = vld [vmem:[%s991] sm:$0xff]
      %v993 = vpack.c.bf16 %v992, %v992
      %s994 = scalar_lea.vmem [#allocation9], 256
      %v995 = vld [vmem:[%s994] sm:$0xff]
      %v996 = vld [vmem:[%s994 + $0x8] sm:$0xff]
      %v997 = vld [vmem:[%s994 + $0x10] sm:$0xff]
      %v998 = vld [vmem:[%s994 + $0x18] sm:$0xff]
      %v999 = vld [vmem:[%s994 + $0x20] sm:$0xff]
      %v1000 = vld [vmem:[%s994 + $0x28] sm:$0xff]
      %v1001 = vld [vmem:[%s994 + $0x30] sm:$0xff]
      %v1002 = vld [vmem:[%s994 + $0x38] sm:$0xff]
      %v1003 = vld [vmem:[%s994 + $0x40] sm:$0xff]
      %v1004 = vld [vmem:[%s994 + $0x48] sm:$0xff]
      %v1005 = vld [vmem:[%s994 + $0x50] sm:$0xff]
      %v1006 = vld [vmem:[%s994 + $0x58] sm:$0xff]
      %v1007 = vld [vmem:[%s994 + $0x60] sm:$0xff]
      %v1008 = vld [vmem:[%s994 + $0x68] sm:$0xff]
      %v1009 = vld [vmem:[%s994 + $0x70] sm:$0xff]
      %v1010 = vld [vmem:[%s994 + $0x78] sm:$0xff]
      %v1011 = vld [vmem:[%s994 + $0x80] sm:$0xff]
      %v1012 = vld [vmem:[%s994 + $0x88] sm:$0xff]
      %v1013 = vld [vmem:[%s994 + $0x90] sm:$0xff]
      %v1014 = vld [vmem:[%s994 + $0x98] sm:$0xff]
      %v1015 = vld [vmem:[%s994 + $0xa0] sm:$0xff]
      %v1016 = vld [vmem:[%s994 + $0xa8] sm:$0xff]
      %v1017 = vld [vmem:[%s994 + $0xb0] sm:$0xff]
      %v1018 = vld [vmem:[%s994 + $0xb8] sm:$0xff]
      %v1019 = vld [vmem:[%s994 + $0xc0] sm:$0xff]
      %v1020 = vld [vmem:[%s994 + $0xc8] sm:$0xff]
      %v1021 = vld [vmem:[%s994 + $0xd0] sm:$0xff]
      %v1022 = vld [vmem:[%s994 + $0xd8] sm:$0xff]
      %v1023 = vld [vmem:[%s994 + $0xe0] sm:$0xff]
      %v1024 = vld [vmem:[%s994 + $0xe8] sm:$0xff]
      %v1025 = vld [vmem:[%s994 + $0xf0] sm:$0xff]
      %v1026 = vld [vmem:[%s994 + $0xf8] sm:$0xff]
      %s1027 = scalar_lea.vmem [#allocation12], 256
      %v1028 = vld [vmem:[%s1027] sm:$0xff]
      %v1029 = vld [vmem:[%s1027 + $0x8] sm:$0xff]
      %v1030 = vld [vmem:[%s1027 + $0x10] sm:$0xff]
      %v1031 = vld [vmem:[%s1027 + $0x18] sm:$0xff]
      %v1032 = vld [vmem:[%s1027 + $0x20] sm:$0xff]
      %v1033 = vld [vmem:[%s1027 + $0x28] sm:$0xff]
      %v1034 = vld [vmem:[%s1027 + $0x30] sm:$0xff]
      %v1035 = vld [vmem:[%s1027 + $0x38] sm:$0xff]
      %v1036 = vld [vmem:[%s1027 + $0x40] sm:$0xff]
      %v1037 = vld [vmem:[%s1027 + $0x48] sm:$0xff]
      %v1038 = vld [vmem:[%s1027 + $0x50] sm:$0xff]
      %v1039 = vld [vmem:[%s1027 + $0x58] sm:$0xff]
      %v1040 = vld [vmem:[%s1027 + $0x60] sm:$0xff]
      %v1041 = vld [vmem:[%s1027 + $0x68] sm:$0xff]
      %v1042 = vld [vmem:[%s1027 + $0x70] sm:$0xff]
      %v1043 = vld [vmem:[%s1027 + $0x78] sm:$0xff]
      %v1044 = vld [vmem:[%s1027 + $0x80] sm:$0xff]
      %v1045 = vld [vmem:[%s1027 + $0x88] sm:$0xff]
      %v1046 = vld [vmem:[%s1027 + $0x90] sm:$0xff]
      %v1047 = vld [vmem:[%s1027 + $0x98] sm:$0xff]
      %v1048 = vld [vmem:[%s1027 + $0xa0] sm:$0xff]
      %v1049 = vld [vmem:[%s1027 + $0xa8] sm:$0xff]
      %v1050 = vld [vmem:[%s1027 + $0xb0] sm:$0xff]
      %v1051 = vld [vmem:[%s1027 + $0xb8] sm:$0xff]
      %v1052 = vld [vmem:[%s1027 + $0xc0] sm:$0xff]
      %v1053 = vld [vmem:[%s1027 + $0xc8] sm:$0xff]
      %v1054 = vld [vmem:[%s1027 + $0xd0] sm:$0xff]
      %v1055 = vld [vmem:[%s1027 + $0xd8] sm:$0xff]
      %v1056 = vld [vmem:[%s1027 + $0xe0] sm:$0xff]
      %v1057 = vld [vmem:[%s1027 + $0xe8] sm:$0xff]
      %v1058 = vld [vmem:[%s1027 + $0xf0] sm:$0xff]
      %v1059 = vld [vmem:[%s1027 + $0xf8] sm:$0xff]
      %v1092 = vunpack.c.l.b16 %v1028
      %v1093 = vunpack.c.h.b16 %v1028
      %v1094 = vunpack.c.l.b16 %v1029
      %v1095 = vunpack.c.h.b16 %v1029
      %v1096 = vunpack.c.l.b16 %v1030
      %v1097 = vunpack.c.h.b16 %v1030
      %v1098 = vunpack.c.l.b16 %v1031
      %v1099 = vunpack.c.h.b16 %v1031
      %v1100 = vunpack.c.l.b16 %v1032
      %v1101 = vunpack.c.h.b16 %v1032
      %v1102 = vunpack.c.l.b16 %v1033
      %v1103 = vunpack.c.h.b16 %v1033
      %v1104 = vunpack.c.l.b16 %v1034
      %v1105 = vunpack.c.h.b16 %v1034
      %v1106 = vunpack.c.l.b16 %v1035
      %v1107 = vunpack.c.h.b16 %v1035
      %v1108 = vunpack.c.l.b16 %v1036
      %v1109 = vunpack.c.h.b16 %v1036
      %v1110 = vunpack.c.l.b16 %v1037
      %v1111 = vunpack.c.h.b16 %v1037
      %v1112 = vunpack.c.l.b16 %v1038
      %v1113 = vunpack.c.h.b16 %v1038
      %v1114 = vunpack.c.l.b16 %v1039
      %v1115 = vunpack.c.h.b16 %v1039
      %v1116 = vunpack.c.l.b16 %v1040
      %v1117 = vunpack.c.h.b16 %v1040
      %v1118 = vunpack.c.l.b16 %v1041
      %v1119 = vunpack.c.h.b16 %v1041
      %v1120 = vunpack.c.l.b16 %v1042
      %v1121 = vunpack.c.h.b16 %v1042
      %v1122 = vunpack.c.l.b16 %v1043
      %v1123 = vunpack.c.h.b16 %v1043
      %v1124 = vunpack.c.l.b16 %v1044
      %v1125 = vunpack.c.h.b16 %v1044
      %v1126 = vunpack.c.l.b16 %v1045
      %v1127 = vunpack.c.h.b16 %v1045
      %v1128 = vunpack.c.l.b16 %v1046
      %v1129 = vunpack.c.h.b16 %v1046
      %v1130 = vunpack.c.l.b16 %v1047
      %v1131 = vunpack.c.h.b16 %v1047
      %v1132 = vunpack.c.l.b16 %v1048
      %v1133 = vunpack.c.h.b16 %v1048
      %v1134 = vunpack.c.l.b16 %v1049
      %v1135 = vunpack.c.h.b16 %v1049
      %v1136 = vunpack.c.l.b16 %v1050
      %v1137 = vunpack.c.h.b16 %v1050
      %v1138 = vunpack.c.l.b16 %v1051
      %v1139 = vunpack.c.h.b16 %v1051
      %v1140 = vunpack.c.l.b16 %v1052
      %v1141 = vunpack.c.h.b16 %v1052
      %v1142 = vunpack.c.l.b16 %v1053
      %v1143 = vunpack.c.h.b16 %v1053
      %v1144 = vunpack.c.l.b16 %v1054
      %v1145 = vunpack.c.h.b16 %v1054
      %v1146 = vunpack.c.l.b16 %v1055
      %v1147 = vunpack.c.h.b16 %v1055
      %v1148 = vunpack.c.l.b16 %v1056
      %v1149 = vunpack.c.h.b16 %v1056
      %v1150 = vunpack.c.l.b16 %v1057
      %v1151 = vunpack.c.h.b16 %v1057
      %v1152 = vunpack.c.l.b16 %v1058
      %v1153 = vunpack.c.h.b16 %v1058
      %v1154 = vunpack.c.l.b16 %v1059
      %v1155 = vunpack.c.h.b16 %v1059
      %v1156 = vpack.c.b16 %v1096, %v1092
      %v1157 = vpack.c.b16 %v1097, %v1093
      %v1158 = vpack.c.b16 %v1098, %v1094
      %v1159 = vpack.c.b16 %v1099, %v1095
      %v1160 = vpack.c.b16 %v1104, %v1100
      %v1161 = vpack.c.b16 %v1105, %v1101
      %v1162 = vpack.c.b16 %v1106, %v1102
      %v1163 = vpack.c.b16 %v1107, %v1103
      %v1164 = vpack.c.b16 %v1112, %v1108
      %v1165 = vpack.c.b16 %v1113, %v1109
      %v1166 = vpack.c.b16 %v1114, %v1110
      %v1167 = vpack.c.b16 %v1115, %v1111
      %v1168 = vpack.c.b16 %v1120, %v1116
      %v1169 = vpack.c.b16 %v1121, %v1117
      %v1170 = vpack.c.b16 %v1122, %v1118
      %v1171 = vpack.c.b16 %v1123, %v1119
      %v1172 = vpack.c.b16 %v1128, %v1124
      %v1173 = vpack.c.b16 %v1129, %v1125
      %v1174 = vpack.c.b16 %v1130, %v1126
      %v1175 = vpack.c.b16 %v1131, %v1127
      %v1176 = vpack.c.b16 %v1136, %v1132
      %v1177 = vpack.c.b16 %v1137, %v1133
      %v1178 = vpack.c.b16 %v1138, %v1134
      %v1179 = vpack.c.b16 %v1139, %v1135
      %v1180 = vpack.c.b16 %v1144, %v1140
      %v1181 = vpack.c.b16 %v1145, %v1141
      %v1182 = vpack.c.b16 %v1146, %v1142
      %v1183 = vpack.c.b16 %v1147, %v1143
      %v1184 = vpack.c.b16 %v1152, %v1148
      %v1185 = vpack.c.b16 %v1153, %v1149
      %v1186 = vpack.c.b16 %v1154, %v1150
      %v1187 = vpack.c.b16 %v1155, %v1151
      %1220 = vmatprep.subr.bf16.mxu0 %v1185
      %1221 = vmatpush1.bf16.msra.mxu0 %v1184
      %1222 = vmatprep.subr.bf16.mxu0 %v1181
      %1223 = vmatpush1.bf16.msra.mxu0 %v1180
      %1224 = vmatprep.subr.bf16.mxu0 %v1177
      %1225 = vmatpush1.bf16.msra.mxu0 %v1176
      %1226 = vmatprep.subr.bf16.mxu0 %v1173
      %1227 = vmatpush1.bf16.msra.mxu0 %v1172
      %1228 = vmatprep.subr.bf16.mxu0 %v1169
      %1229 = vmatpush1.bf16.msra.mxu0 %v1168
      %1230 = vmatprep.subr.bf16.mxu0 %v1165
      %1231 = vmatpush1.bf16.msra.mxu0 %v1164
      %1232 = vmatprep.subr.bf16.mxu0 %v1161
      %1233 = vmatpush1.bf16.msra.mxu0 %v1160
      %1234 = vmatprep.subr.bf16.mxu0 %v1157
      %1235 = vmatpush1.bf16.msra.mxu0 %v1156
      %1236 = vmatprep.subr.bf16.mxu0 0
      %1237 = vmatpush2.bf16.msra.mxu0 0
      %1238 = vmatprep.subr.bf16.mxu0 0
      %1239 = vmatpush2.bf16.msra.mxu0 0
      %1240 = vmatprep.subr.bf16.mxu0 0
      %1241 = vmatpush2.bf16.msra.mxu0 0
      %1242 = vmatprep.subr.bf16.mxu0 0
      %1243 = vmatpush2.bf16.msra.mxu0 0
      %1244 = vmatprep.subr.bf16.mxu0 0
      %1245 = vmatpush2.bf16.msra.mxu0 0
      %1246 = vmatprep.subr.bf16.mxu0 0
      %1247 = vmatpush2.bf16.msra.mxu0 0
      %1248 = vmatprep.subr.bf16.mxu0 0
      %1249 = vmatpush2.bf16.msra.mxu0 0
      %1250 = vmatprep.subr.bf16.mxu0 0
      %1251 = vmatpush2.bf16.msra.mxu0 0
      %1252 = vmatprep.mubr.bf16.mxu0 0
      %1253 = vmatmul.mubr.bf16.gmra.mxu0 %v993
      %v1254 = vpop.f32.mrf.mxu0
      %v1255 = vadd.f32 0.0, %v1254
      %v1256 = vpop.f32.mrf.mxu0
      %v1257 = vadd.f32 0.0, %v1256
      %v1258 = vpop.f32.mrf.mxu0
      %v1259 = vpop.f32.mrf.mxu0
      %1260 = vdwg.mxu0
      %1261 = vmatprep.subr.bf16.mxu0 %v1187
      %1262 = vmatpush1.bf16.msra.mxu0 %v1186
      %1263 = vmatprep.subr.bf16.mxu0 %v1183
      %1264 = vmatpush1.bf16.msra.mxu0 %v1182
      %1265 = vmatprep.subr.bf16.mxu0 %v1179
      %1266 = vmatpush1.bf16.msra.mxu0 %v1178
      %1267 = vmatprep.subr.bf16.mxu0 %v1175
      %1268 = vmatpush1.bf16.msra.mxu0 %v1174
      %1269 = vmatprep.subr.bf16.mxu0 %v1171
      %1270 = vmatpush1.bf16.msra.mxu0 %v1170
      %1271 = vmatprep.subr.bf16.mxu0 %v1167
      %1272 = vmatpush1.bf16.msra.mxu0 %v1166
      %1273 = vmatprep.subr.bf16.mxu0 %v1163
      %1274 = vmatpush1.bf16.msra.mxu0 %v1162
      %1275 = vmatprep.subr.bf16.mxu0 %v1159
      %1276 = vmatpush1.bf16.msra.mxu0 %v1158
      %1277 = vmatprep.subr.bf16.mxu0 0
      %1278 = vmatpush2.bf16.msra.mxu0 0
      %1279 = vmatprep.subr.bf16.mxu0 0
      %1280 = vmatpush2.bf16.msra.mxu0 0
      %1281 = vmatprep.subr.bf16.mxu0 0
      %1282 = vmatpush2.bf16.msra.mxu0 0
      %1283 = vmatprep.subr.bf16.mxu0 0
      %1284 = vmatpush2.bf16.msra.mxu0 0
      %1285 = vmatprep.subr.bf16.mxu0 0
      %1286 = vmatpush2.bf16.msra.mxu0 0
      %1287 = vmatprep.subr.bf16.mxu0 0
      %1288 = vmatpush2.bf16.msra.mxu0 0
      %1289 = vmatprep.subr.bf16.mxu0 0
      %1290 = vmatpush2.bf16.msra.mxu0 0
      %1291 = vmatprep.subr.bf16.mxu0 0
      %1292 = vmatpush2.bf16.msra.mxu0 0
      %1293 = vmatprep.mubr.bf16.mxu0 0
      %1294 = vmatmul.mubr.bf16.gmra.mxu0 %v993
      %v1295 = vpop.f32.mrf.mxu0
      %v1296 = vadd.f32 0.0, %v1295
      %v1297 = vpop.f32.mrf.mxu0
      %v1298 = vadd.f32 0.0, %v1297
      %v1299 = vpop.f32.mrf.mxu0
      %v1300 = vpop.f32.mrf.mxu0
      %1301 = vdwg.mxu0
      %v1334 = vunpack.c.l.b16 %v995
      %v1335 = vunpack.c.h.b16 %v995
      %v1336 = vunpack.c.l.b16 %v996
      %v1337 = vunpack.c.h.b16 %v996
      %v1338 = vunpack.c.l.b16 %v997
      %v1339 = vunpack.c.h.b16 %v997
      %v1340 = vunpack.c.l.b16 %v998
      %v1341 = vunpack.c.h.b16 %v998
      %v1342 = vunpack.c.l.b16 %v999
      %v1343 = vunpack.c.h.b16 %v999
      %v1344 = vunpack.c.l.b16 %v1000
      %v1345 = vunpack.c.h.b16 %v1000
      %v1346 = vunpack.c.l.b16 %v1001
      %v1347 = vunpack.c.h.b16 %v1001
      %v1348 = vunpack.c.l.b16 %v1002
      %v1349 = vunpack.c.h.b16 %v1002
      %v1350 = vunpack.c.l.b16 %v1003
      %v1351 = vunpack.c.h.b16 %v1003
      %v1352 = vunpack.c.l.b16 %v1004
      %v1353 = vunpack.c.h.b16 %v1004
      %v1354 = vunpack.c.l.b16 %v1005
      %v1355 = vunpack.c.h.b16 %v1005
      %v1356 = vunpack.c.l.b16 %v1006
      %v1357 = vunpack.c.h.b16 %v1006
      %v1358 = vunpack.c.l.b16 %v1007
      %v1359 = vunpack.c.h.b16 %v1007
      %v1360 = vunpack.c.l.b16 %v1008
      %v1361 = vunpack.c.h.b16 %v1008
      %v1362 = vunpack.c.l.b16 %v1009
      %v1363 = vunpack.c.h.b16 %v1009
      %v1364 = vunpack.c.l.b16 %v1010
      %v1365 = vunpack.c.h.b16 %v1010
      %v1366 = vunpack.c.l.b16 %v1011
      %v1367 = vunpack.c.h.b16 %v1011
      %v1368 = vunpack.c.l.b16 %v1012
      %v1369 = vunpack.c.h.b16 %v1012
      %v1370 = vunpack.c.l.b16 %v1013
      %v1371 = vunpack.c.h.b16 %v1013
      %v1372 = vunpack.c.l.b16 %v1014
      %v1373 = vunpack.c.h.b16 %v1014
      %v1374 = vunpack.c.l.b16 %v1015
      %v1375 = vunpack.c.h.b16 %v1015
      %v1376 = vunpack.c.l.b16 %v1016
      %v1377 = vunpack.c.h.b16 %v1016
      %v1378 = vunpack.c.l.b16 %v1017
      %v1379 = vunpack.c.h.b16 %v1017
      %v1380 = vunpack.c.l.b16 %v1018
      %v1381 = vunpack.c.h.b16 %v1018
      %v1382 = vunpack.c.l.b16 %v1019
      %v1383 = vunpack.c.h.b16 %v1019
      %v1384 = vunpack.c.l.b16 %v1020
      %v1385 = vunpack.c.h.b16 %v1020
      %v1386 = vunpack.c.l.b16 %v1021
      %v1387 = vunpack.c.h.b16 %v1021
      %v1388 = vunpack.c.l.b16 %v1022
      %v1389 = vunpack.c.h.b16 %v1022
      %v1390 = vunpack.c.l.b16 %v1023
      %v1391 = vunpack.c.h.b16 %v1023
      %v1392 = vunpack.c.l.b16 %v1024
      %v1393 = vunpack.c.h.b16 %v1024
      %v1394 = vunpack.c.l.b16 %v1025
      %v1395 = vunpack.c.h.b16 %v1025
      %v1396 = vunpack.c.l.b16 %v1026
      %v1397 = vunpack.c.h.b16 %v1026
      %v1398 = vpack.c.b16 %v1338, %v1334
      %v1399 = vpack.c.b16 %v1339, %v1335
      %v1400 = vpack.c.b16 %v1340, %v1336
      %v1401 = vpack.c.b16 %v1341, %v1337
      %v1402 = vpack.c.b16 %v1346, %v1342
      %v1403 = vpack.c.b16 %v1347, %v1343
      %v1404 = vpack.c.b16 %v1348, %v1344
      %v1405 = vpack.c.b16 %v1349, %v1345
      %v1406 = vpack.c.b16 %v1354, %v1350
      %v1407 = vpack.c.b16 %v1355, %v1351
      %v1408 = vpack.c.b16 %v1356, %v1352
      %v1409 = vpack.c.b16 %v1357, %v1353
      %v1410 = vpack.c.b16 %v1362, %v1358
      %v1411 = vpack.c.b16 %v1363, %v1359
      %v1412 = vpack.c.b16 %v1364, %v1360
      %v1413 = vpack.c.b16 %v1365, %v1361
      %v1414 = vpack.c.b16 %v1370, %v1366
      %v1415 = vpack.c.b16 %v1371, %v1367
      %v1416 = vpack.c.b16 %v1372, %v1368
      %v1417 = vpack.c.b16 %v1373, %v1369
      %v1418 = vpack.c.b16 %v1378, %v1374
      %v1419 = vpack.c.b16 %v1379, %v1375
      %v1420 = vpack.c.b16 %v1380, %v1376
      %v1421 = vpack.c.b16 %v1381, %v1377
      %v1422 = vpack.c.b16 %v1386, %v1382
      %v1423 = vpack.c.b16 %v1387, %v1383
      %v1424 = vpack.c.b16 %v1388, %v1384
      %v1425 = vpack.c.b16 %v1389, %v1385
      %v1426 = vpack.c.b16 %v1394, %v1390
      %v1427 = vpack.c.b16 %v1395, %v1391
      %v1428 = vpack.c.b16 %v1396, %v1392
      %v1429 = vpack.c.b16 %v1397, %v1393
      %1462 = vmatprep.subr.bf16.mxu0 %v1427
      %1463 = vmatpush1.bf16.msra.mxu0 %v1426
      %1464 = vmatprep.subr.bf16.mxu0 %v1423
      %1465 = vmatpush1.bf16.msra.mxu0 %v1422
      %1466 = vmatprep.subr.bf16.mxu0 %v1419
      %1467 = vmatpush1.bf16.msra.mxu0 %v1418
      %1468 = vmatprep.subr.bf16.mxu0 %v1415
      %1469 = vmatpush1.bf16.msra.mxu0 %v1414
      %1470 = vmatprep.subr.bf16.mxu0 %v1411
      %1471 = vmatpush1.bf16.msra.mxu0 %v1410
      %1472 = vmatprep.subr.bf16.mxu0 %v1407
      %1473 = vmatpush1.bf16.msra.mxu0 %v1406
      %1474 = vmatprep.subr.bf16.mxu0 %v1403
      %1475 = vmatpush1.bf16.msra.mxu0 %v1402
      %1476 = vmatprep.subr.bf16.mxu0 %v1399
      %1477 = vmatpush1.bf16.msra.mxu0 %v1398
      %1478 = vmatprep.subr.bf16.mxu0 0
      %1479 = vmatpush2.bf16.msra.mxu0 0
      %1480 = vmatprep.subr.bf16.mxu0 0
      %1481 = vmatpush2.bf16.msra.mxu0 0
      %1482 = vmatprep.subr.bf16.mxu0 0
      %1483 = vmatpush2.bf16.msra.mxu0 0
      %1484 = vmatprep.subr.bf16.mxu0 0
      %1485 = vmatpush2.bf16.msra.mxu0 0
      %1486 = vmatprep.subr.bf16.mxu0 0
      %1487 = vmatpush2.bf16.msra.mxu0 0
      %1488 = vmatprep.subr.bf16.mxu0 0
      %1489 = vmatpush2.bf16.msra.mxu0 0
      %1490 = vmatprep.subr.bf16.mxu0 0
      %1491 = vmatpush2.bf16.msra.mxu0 0
      %1492 = vmatprep.subr.bf16.mxu0 0
      %1493 = vmatpush2.bf16.msra.mxu0 0
      %1494 = vmatprep.mubr.bf16.mxu0 0
      %1495 = vmatmul.mubr.bf16.gmra.mxu0 %v990
      %v1496 = vpop.f32.mrf.mxu0
      %v1497 = vadd.f32 %v1255, %v1496
      %v1498 = vpop.f32.mrf.mxu0
      %v1499 = vadd.f32 %v1257, %v1498
      %v1500 = vpop.f32.mrf.mxu0
      %v1501 = vpop.f32.mrf.mxu0
      %1502 = vdwg.mxu0
      %1503 = vmatprep.subr.bf16.mxu0 %v1429
      %1504 = vmatpush1.bf16.msra.mxu0 %v1428
      %1505 = vmatprep.subr.bf16.mxu0 %v1425
      %1506 = vmatpush1.bf16.msra.mxu0 %v1424
      %1507 = vmatprep.subr.bf16.mxu0 %v1421
      %1508 = vmatpush1.bf16.msra.mxu0 %v1420
      %1509 = vmatprep.subr.bf16.mxu0 %v1417
      %1510 = vmatpush1.bf16.msra.mxu0 %v1416
      %1511 = vmatprep.subr.bf16.mxu0 %v1413
      %1512 = vmatpush1.bf16.msra.mxu0 %v1412
      %1513 = vmatprep.subr.bf16.mxu0 %v1409
      %1514 = vmatpush1.bf16.msra.mxu0 %v1408
      %1515 = vmatprep.subr.bf16.mxu0 %v1405
      %1516 = vmatpush1.bf16.msra.mxu0 %v1404
      %1517 = vmatprep.subr.bf16.mxu0 %v1401
      %1518 = vmatpush1.bf16.msra.mxu0 %v1400
      %1519 = vmatprep.subr.bf16.mxu0 0
      %1520 = vmatpush2.bf16.msra.mxu0 0
      %1521 = vmatprep.subr.bf16.mxu0 0
      %1522 = vmatpush2.bf16.msra.mxu0 0
      %1523 = vmatprep.subr.bf16.mxu0 0
      %1524 = vmatpush2.bf16.msra.mxu0 0
      %1525 = vmatprep.subr.bf16.mxu0 0
      %1526 = vmatpush2.bf16.msra.mxu0 0
      %1527 = vmatprep.subr.bf16.mxu0 0
      %1528 = vmatpush2.bf16.msra.mxu0 0
      %1529 = vmatprep.subr.bf16.mxu0 0
      %1530 = vmatpush2.bf16.msra.mxu0 0
      %1531 = vmatprep.subr.bf16.mxu0 0
      %1532 = vmatpush2.bf16.msra.mxu0 0
      %1533 = vmatprep.subr.bf16.mxu0 0
      %1534 = vmatpush2.bf16.msra.mxu0 0
      %1535 = vmatprep.mubr.bf16.mxu0 0
      %1536 = vmatmul.mubr.bf16.gmra.mxu0 %v990
      %v1537 = vpop.f32.mrf.mxu0
      %v1538 = vadd.f32 %v1296, %v1537
      %v1539 = vpop.f32.mrf.mxu0
      %v1540 = vadd.f32 %v1298, %v1539
      %v1541 = vpop.f32.mrf.mxu0
      %v1542 = vpop.f32.mrf.mxu0
      %1543 = vdwg.mxu0
      %s1544 = scalar_lea.vmem %s5, 4
      %v1545 = vld [vmem:[%s1544] sm:$0xf]
      %v1547 = vlaneseq
      %v1548 = vshrl.u32 %v1547, 7
      %v1549 = vsub.s32 0, %v1548
      %v1550 = vrot.slane %v1545, %v1549
      %v1551 = vlaneseq
      %v1552 = vshrl.u32 %v1551, 7
      %v1553 = vsub.s32 1, %v1552
      %v1554 = vrot.slane %v1545, %v1553
      %v1555 = vlaneseq
      %v1556 = vshrl.u32 %v1555, 7
      %v1557 = vsub.s32 2, %v1556
      %v1558 = vrot.slane %v1545, %v1557
      %v1559 = vlaneseq
      %v1560 = vshrl.u32 %v1559, 7
      %v1561 = vsub.s32 3, %v1560
      %v1562 = vrot.slane %v1545, %v1561
      %v1567 = vadd.f32 %v1497, %v1550
      %v1568 = vadd.f32 %v1499, %v1554
      %v1569 = vadd.f32 %v1538, %v1558
      %v1570 = vadd.f32 %v1540, %v1562
      %v1571 = vxor.u32 %v1567, 2147483648
      %v1572 = vmul.f32 %v1571, 1.442695
      %v1573 = vpow.pop %v1572
      %v1574 = vadd.f32 %v1573, 1.0
      %v1575 = vrcp.pop %v1574
      %v1576 = vmul.f32 1.0, %v1575
      %v1577 = vtanh.pop %v1569
      %v1578 = vmul.f32 %v1576, %v1577
      %v1579 = vxor.u32 %v1568, 2147483648
      %v1580 = vmul.f32 %v1579, 1.442695
      %v1581 = vpow.pop %v1580
      %v1582 = vadd.f32 %v1581, 1.0
      %v1583 = vrcp.pop %v1582
      %v1584 = vmul.f32 1.0, %v1583
      %s1585 = scalar_lea.vmem [#allocation3], 8
      %v1586 = vld [vmem:[%s1585] sm:$0xff]
      %v1587 = vmul.f32 %v1584, %v1586
      %v1588 = vadd.f32 %v1587, %v1578
      %v1589 = vxor.u32 %v1570, 2147483648
      %v1590 = vmul.f32 %v1589, 1.442695
      %v1591 = vpow.pop %v1590
      %v1592 = vadd.f32 %v1591, 1.0
      %v1593 = vrcp.pop %v1592
      %v1594 = vmul.f32 1.0, %v1593
      %v1595 = vtanh.pop %v1588
      %v1596 = vmul.f32 %v1594, %v1595
      %1597 = vst [vmem:[%s1585] sm:$0xff] %v1588
      %1598 = vst [vmem:[%s991] sm:$0xff] %v1596
      %1599 = vst [vmem:[#allocation4] sm:$0xff] %v1596
      %v1600 = vpack.c.bf16 %v1596, %v1596
      %v1603 = vunpack.c.l.b16 %v86
      %v1604 = vunpack.c.l.b16 %v87
      %v1605 = vpack.c.b16 %v1604, %v1603
      %1607 = vmatprep.subr.bf16.mxu0 0
      %1608 = vmatpush1.bf16.xpose.msra.mxu0 0
      %1609 = vmatprep.subr.bf16.mxu0 0
      %1610 = vmatpush1.bf16.xpose.msra.mxu0 0
      %1611 = vmatprep.subr.bf16.mxu0 0
      %1612 = vmatpush1.bf16.xpose.msra.mxu0 0
      %1613 = vmatprep.subr.bf16.mxu0 0
      %1614 = vmatpush1.bf16.xpose.msra.mxu0 0
      %1615 = vmatprep.subr.bf16.mxu0 0
      %1616 = vmatpush1.bf16.xpose.msra.mxu0 0
      %1617 = vmatprep.subr.bf16.mxu0 0
      %1618 = vmatpush1.bf16.xpose.msra.mxu0 0
      %1619 = vmatprep.subr.bf16.mxu0 0
      %1620 = vmatpush1.bf16.xpose.msra.mxu0 0
      %1621 = vmatprep.subr.bf16.mxu0 0
      %1622 = vmatpush1.bf16.xpose.msra.mxu0 %v1605
      %1623 = vmatprep.subr.bf16.mxu0 0
      %1624 = vmatpush2.bf16.xpose.msra.mxu0 0
      %1625 = vmatprep.subr.bf16.mxu0 0
      %1626 = vmatpush2.bf16.xpose.msra.mxu0 0
      %1627 = vmatprep.subr.bf16.mxu0 0
      %1628 = vmatpush2.bf16.xpose.msra.mxu0 0
      %1629 = vmatprep.subr.bf16.mxu0 0
      %1630 = vmatpush2.bf16.xpose.msra.mxu0 0
      %1631 = vmatprep.subr.bf16.mxu0 0
      %1632 = vmatpush2.bf16.xpose.msra.mxu0 0
      %1633 = vmatprep.subr.bf16.mxu0 0
      %1634 = vmatpush2.bf16.xpose.msra.mxu0 0
      %1635 = vmatprep.subr.bf16.mxu0 0
      %1636 = vmatpush2.bf16.xpose.msra.mxu0 0
      %1637 = vmatprep.subr.bf16.mxu0 0
      %1638 = vmatpush2.bf16.xpose.msra.mxu0 0
      %1639 = vmatprep.mubr.bf16.mxu0 0
      %1640 = vmatmul.mubr.bf16.gmra.mxu0 %v1600
      %v1641 = vpop.f32.mrf.mxu0
      %v1642 = vadd.f32 0.0, %v1641
      %v1643 = vpop.f32.mrf.mxu0
      %v1644 = vpop.f32.mrf.mxu0
      %v1645 = vpop.f32.mrf.mxu0
      %1646 = vdwg.mxu0
      %v1647 = vsel %vm98, %v1642, -1e+30
      %vm1648 = vcmask 130048
      %v1649 = vsel %vm1648, %v1647, -inf
      %1650 = vmax.xlane.f32.xlu0 %v1649
      %v1651 = vpop.xlane.xlu0 %1650
      %v1652 = vsub.f32 %v1647, %v1651
      %v1653 = vmul.f32 %v1652, 1.442695
      %v1654 = vpow.pop %v1653
      %v1655 = vsel %vm98, %v1654, 0.0
      %v1656 = vsel %vm1648, %v1655, 0.0
      %1657 = vadd.xlane.f32.xlu0 %v1656
      %v1658 = vpop.xlane.xlu0 %1657
      %v1659 = vmax.f32 %v1658, 1e-30
      %v1660 = vpack.c.bf16 %v1655, %v1655
      %v1662 = vsel %vm1648, %v1660, 0
      %1664 = vmatprep.subr.bf16.mxu0 0
      %1665 = vmatpush1.bf16.msra.mxu0 0
      %1666 = vmatprep.subr.bf16.mxu0 0
      %1667 = vmatpush1.bf16.msra.mxu0 0
      %1668 = vmatprep.subr.bf16.mxu0 0
      %1669 = vmatpush1.bf16.msra.mxu0 0
      %1670 = vmatprep.subr.bf16.mxu0 0
      %1671 = vmatpush1.bf16.msra.mxu0 0
      %1672 = vmatprep.subr.bf16.mxu0 0
      %1673 = vmatpush1.bf16.msra.mxu0 0
      %1674 = vmatprep.subr.bf16.mxu0 0
      %1675 = vmatpush1.bf16.msra.mxu0 0
      %1676 = vmatprep.subr.bf16.mxu0 0
      %1677 = vmatpush1.bf16.msra.mxu0 0
      %1678 = vmatprep.subr.bf16.mxu0 0
      %1679 = vmatpush1.bf16.msra.mxu0 %v1605
      %1680 = vmatprep.subr.bf16.mxu0 0
      %1681 = vmatpush2.bf16.msra.mxu0 0
      %1682 = vmatprep.subr.bf16.mxu0 0
      %1683 = vmatpush2.bf16.msra.mxu0 0
      %1684 = vmatprep.subr.bf16.mxu0 0
      %1685 = vmatpush2.bf16.msra.mxu0 0
      %1686 = vmatprep.subr.bf16.mxu0 0
      %1687 = vmatpush2.bf16.msra.mxu0 0
      %1688 = vmatprep.subr.bf16.mxu0 0
      %1689 = vmatpush2.bf16.msra.mxu0 0
      %1690 = vmatprep.subr.bf16.mxu0 0
      %1691 = vmatpush2.bf16.msra.mxu0 0
      %1692 = vmatprep.subr.bf16.mxu0 0
      %1693 = vmatpush2.bf16.msra.mxu0 0
      %1694 = vmatprep.subr.bf16.mxu0 0
      %1695 = vmatpush2.bf16.msra.mxu0 0
      %1696 = vmatprep.mubr.bf16.mxu0 0
      %1697 = vmatmul.mubr.bf16.gmra.mxu0 %v1662
      %v1698 = vpop.f32.mrf.mxu0
      %v1699 = vadd.f32 0.0, %v1698
      %v1700 = vpop.f32.mrf.mxu0
      %v1701 = vpop.f32.mrf.mxu0
      %v1702 = vpop.f32.mrf.mxu0
      %1703 = vdwg.mxu0
      %v1704 = vrcp.pop %v1659
      %v1705 = vmul.f32 %v1699, %v1704
      %1706 = vst [vmem:[#allocation5] sm:$0xff] %v1705
    $region46: #{tpu_custom_call.1} parent=1 // loop_footer
      %s104 = sadd.s32 1, %s100
    $region47: #{tpu_custom_call.1} parent=1 // loop_footer_branch
      %99 = sbr.rel target = $region43
    $region48: #{tpu_custom_call.1} parent=1 // loop_exit
      _
    %v1707 = vld [vmem:[#allocation4] sm:$0xff]
    %1708 = vst [vmem:[#allocation14] sm:$0xff] %v1707
    %v1709 = vld [vmem:[#allocation5] sm:$0xff]
    %1710 = vst [vmem:[#allocation14 + $0x8] sm:$0xff] %v1709
    // Predicated region
    $region49: #{tpu_custom_call.1} parent=1 // pred_check
      _
    $region50: #{tpu_custom_call.1} parent=1 // pred_check_branch
      %1712 = sbr.rel (0) target = $region52
    $region51: #{tpu_custom_call.1} parent=1 // pred_region
      %s1714 = ssub.s32 256, 256
      %1715 = vsyncadd [#allocation8], %s1714
      %s1717 = sshll.u32 [#allocation14], 4
      %s1718 = int_to_ptr.vmem [resolvable:$true] %s1717
      %1720 = dma.vmem_to_hbm [thread:$0]  %s1718, 256, %s6, [#allocation8]
    $region52: #{tpu_custom_call.1} parent=1 // pred_fallthru
      _
    // Predicated region
    $region53: #{tpu_custom_call.1} parent=1 // pred_check
      _
    $region54: #{tpu_custom_call.1} parent=1 // pred_check_branch
      %1722 = sbr.rel (0) target = $region56
    $region55: #{tpu_custom_call.1} parent=1 // pred_region
      %1723 = dma.done [#allocation8], 256
    $region56: #{tpu_custom_call.1} parent=1 // pred_fallthru
      _
    %1724 = vsyncpa [#allocation7], 1
    %1725 = vsyncpa [#allocation10], 1
    %1726 = vsyncpa [#allocation13], 1
    %1727 = vsyncpa [#allocation8], 1

</llo_original>
